<compile_context>
chip_gen: v6e
topology: v6e:2x2x1
jax: 0.10.0
libtpu: 0.0.40
codegen_flags: <defaults>
</compile_context>

<pallas_src>
import jax
import jax.numpy as jnp
from jax.experimental import pallas as pl
from jax.experimental.pallas import tpu as pltpu


def cnn_classifier_pallas(input_ids, attention_mask, emb_table, conv_params,
                          fc_w, fc_b, filter_sizes, num_classes, *,
                          batch_tile=8):
    """input_ids/attention_mask: (B, S) int; emb_table: (V, E) f32;
    conv_params: list of (w[fs, E, F], b[1, F]); fc_w: (n*F, C); fc_b: (1, C)."""
    B, S = input_ids.shape
    V, E = emb_table.shape
    F = conv_params[0][0].shape[-1]
    n = len(filter_sizes)
    fs_max = max(filter_sizes)
    NF = n * F
    NFP = 128                      # lane-dense filter axis (pad n*F -> 128)
    CP = 128                       # lane-dense logits (pad num_classes -> 128)
    KE = fs_max * E                # im2col depth (fs_max * E)
    assert NF <= NFP and num_classes <= CP

    TB = min(batch_tile, B)
    while B % TB:                  # tile must hold whole sequences / divide B
        TB -= 1
    TBS = TB * S
    LAG = min(8, TBS)              # max outstanding gather DMAs per tile

    # ---- operand packing (wrapper-side, plain JAX) -------------------------
    # Masked tokens -> id V, which indexes the appended all-zero row.
    emb_ext = jnp.concatenate(
        [emb_table.astype(jnp.float32), jnp.zeros((1, E), jnp.float32)], axis=0)
    ids_flat = jnp.where(attention_mask > 0, input_ids,
                         V).astype(jnp.int32).reshape(B * S)

    # One conv-weight slab (KE, 128) bf16 covering every filter size, and one
    # combined bias / time-validity slab pre-tiled to the batch tile (TBS, 128):
    # valid positions hold the conv bias, invalid positions hold -1e30.
    w_blocks, bm_cols = [], []
    t_idx = jnp.arange(S, dtype=jnp.float32)[:, None]             # (S, 1)
    for (w, b), fs in zip(conv_params, filter_sizes):
        w_pad = jnp.zeros((fs_max, E, F), jnp.float32).at[:fs].set(w)
        w_blocks.append(w_pad.reshape(KE, F))
        valid = (t_idx <= float(S - fs)).astype(jnp.float32)      # (S, 1)
        bm_cols.append(valid * b + (1.0 - valid) * (-1e30))       # (S, F)
    w_slab = (jnp.zeros((KE, NFP), jnp.float32)
              .at[:, :NF].set(jnp.concatenate(w_blocks, axis=1))
              .astype(jnp.bfloat16))
    bias_mask = (jnp.zeros((S, NFP), jnp.float32)
                 .at[:, :NF].set(jnp.concatenate(bm_cols, axis=1)))
    bias_mask = jnp.tile(bias_mask, (TB, 1))                      # (TBS, NFP)

    fc_w_pad = (jnp.zeros((NFP, CP), jnp.float32)
                .at[:NF, :num_classes].set(fc_w).astype(jnp.bfloat16))
    fc_b_pad = jnp.zeros((1, CP), jnp.float32).at[:, :num_classes].set(fc_b)

    # ---- kernel -------------------------------------------------------------
    def kernel(ids_ref, emb_hbm, w_ref, bm_ref, fcw_ref, fcb_ref, out_ref,
               x_ref, xw_ref, sem):
        base = pl.program_id(0) * TBS

        # Gather: one row DMA per token, HBM -> VMEM scratch.  Masked tokens
        # carry id V which indexes the appended all-zero row.  All row copies
        # are identically sized, so a same-shape descriptor can wait on any of
        # them; the lag bounds the number of outstanding DMAs.
        def row_copy(dst_row, tok):
            return pltpu.make_async_copy(emb_hbm.at[pl.ds(tok, 1)],
                                         x_ref.at[pl.ds(dst_row, 1)], sem)

        def issue(i, carry):
            row_copy(i, ids_ref[base + i]).start()

            @pl.when(i >= LAG)
            def _():
                row_copy(0, 0).wait()
            return carry
        jax.lax.fori_loop(0, TBS, issue, 0)

        def drain(i, carry):
            row_copy(0, 0).wait()
            return carry
        jax.lax.fori_loop(0, LAG, drain, 0)

        # im2col into the bf16 scratch: lanes [k*E, (k+1)*E) of row r hold
        # embedding row r+k.  Rows past the tile end stay zero; they (and any
        # window crossing a sequence boundary) only feed time positions that
        # the validity mask below removes.
        xw_ref[...] = jnp.zeros_like(xw_ref)
        for k in range(fs_max):                       # tiny static unroll
            xw_ref[pl.ds(0, TBS - k), pl.ds(k * E, E)] = (
                x_ref[pl.ds(k, TBS - k), :].astype(jnp.bfloat16))

        # One depth-KE MXU matmul covering every filter size at once
        # (bf16 operands, f32 accumulation), lane-dense 128-wide output.
        scores = jnp.dot(xw_ref[...], w_ref[...],
                         preferred_element_type=jnp.float32)      # (TBS, NFP)

        # Conv bias + per-filter-size time-validity mask (2D, f32, select).
        bm = bm_ref[...]
        scores = jnp.where(bm > -1e29, scores + bm, jnp.float32(-1e30))

        # Max over time within each sequence, then ReLU (ReLU is monotone, so
        # this equals the reference's max-over-time of relu(conv + bias)).
        pooled = jnp.maximum(jnp.max(scores.reshape(TB, S, NFP), axis=1), 0.0)

        # Dropout == identity (inference); final linear layer (bf16 matmul,
        # f32 accumulation + bias), lane-dense padded class axis.
        logits = jnp.dot(pooled.astype(jnp.bfloat16), fcw_ref[...],
                         preferred_element_type=jnp.float32) + fcb_ref[...]
        out_ref[...] = logits.astype(out_ref.dtype)

    cost = pl.CostEstimate(
        flops=2 * B * S * KE * NFP + 2 * B * NFP * CP,
        transcendentals=0,
        bytes_accessed=(B * S * (4 + 4 * E) + KE * NFP * 2 + TBS * NFP * 4
                        + NFP * CP * 2 + CP * 4 + B * CP * 4))

    out = pl.pallas_call(
        kernel,
        out_shape=jax.ShapeDtypeStruct((B, CP), jnp.float32),
        grid_spec=pltpu.PrefetchScalarGridSpec(
            num_scalar_prefetch=1,                    # ids -> SMEM
            grid=(B // TB,),                          # whole sequences per tile
            in_specs=[
                pl.BlockSpec(memory_space=pl.ANY),                 # emb table (HBM)
                pl.BlockSpec((KE, NFP), lambda b, ids: (0, 0)),    # conv slab
                pl.BlockSpec((TBS, NFP), lambda b, ids: (0, 0)),   # bias/time mask
                pl.BlockSpec((NFP, CP), lambda b, ids: (0, 0)),    # fc weight
                pl.BlockSpec((1, CP), lambda b, ids: (0, 0)),      # fc bias
            ],
            out_specs=pl.BlockSpec((TB, CP), lambda b, ids: (b, 0)),
            scratch_shapes=[
                pltpu.VMEM((TBS, E), jnp.float32),     # gathered embeddings
                pltpu.VMEM((TBS, KE), jnp.bfloat16),   # im2col rows
                pltpu.SemaphoreType.DMA,               # gather DMA semaphore
            ]),
        compiler_params=pltpu.CompilerParams(
            dimension_semantics=("parallel",),
            vmem_limit_bytes=32 * 1024 * 1024),
        cost_estimate=cost,
    )(ids_flat, emb_ext, w_slab, bias_mask, fc_w_pad, fc_b_pad)
    return out[:, :num_classes]


# ---------------------------------------------------------------------------
# Plain-JAX glue: synthetic "BERT" embeddings + parameters + reference
# ---------------------------------------------------------------------------
def synthetic_bert_last_hidden_state(emb_table, input_ids, attention_mask):
    # TODO(synk): stands in for AutoModel.from_pretrained(...) — embedding
    # lookup masked by attention_mask instead of a full transformer encoder.
    emb = emb_table[input_ids]                                      # (B, S, E)
    return emb * attention_mask[..., None].astype(emb.dtype)


def make_params(key, vocab_size, embedding_dim, num_filters, filter_sizes,
                num_classes):
    keys = jax.random.split(key, 3 + 2 * len(filter_sizes))
    emb_table = jax.random.normal(keys[0], (vocab_size, embedding_dim),
                                  jnp.float32) * 0.02
    conv_params = []
    for i, fs in enumerate(filter_sizes):
        kw, kb = keys[1 + 2 * i], keys[2 + 2 * i]
        fan_in = fs * embedding_dim
        bound = 1.0 / jnp.sqrt(fan_in)
        w = jax.random.uniform(kw, (fs, embedding_dim, num_filters),
                               jnp.float32, -bound, bound)
        b = jax.random.uniform(kb, (1, num_filters), jnp.float32, -bound, bound)
        conv_params.append((w, b))
    d = num_filters * len(filter_sizes)
    bound = 1.0 / jnp.sqrt(d)
    fc_w = jax.random.uniform(keys[-2], (d, num_classes), jnp.float32,
                              -bound, bound)
    fc_b = jax.random.uniform(keys[-1], (1, num_classes), jnp.float32,
                              -bound, bound)
    return emb_table, conv_params, fc_w, fc_b


def reference_forward(x, conv_params, fc_w, fc_b, filter_sizes):
    """Pure-JAX f32 reference mirroring the PyTorch CNNClassifier."""
    B, S, E = x.shape
    pooled = []
    for (w, b), fs in zip(conv_params, filter_sizes):
        T = S - fs + 1
        windows = jnp.stack([x[:, t:t + fs, :] for t in range(T)], axis=1)
        scores = jnp.einsum("btke,kef->btf", windows, w) + b[0]
        pooled.append(jnp.max(jax.nn.relu(scores), axis=1))
    cat = jnp.concatenate(pooled, axis=1)
    return cat @ fc_w + fc_b[0]


if __name__ == "__main__":
    # Small shapes consistent with the module's forward.  batch=16 so the
    # batch-tile grid (TB=8 -> grid=(2,)) is actually exercised.
    batch, seq_len, embedding_dim = 16, 16, 32
    vocab_size = 50
    num_filters = 8
    filter_sizes = (2, 3, 4)
    num_classes = 4

    key = jax.random.PRNGKey(0)
    k_ids, k_mask, k_params = jax.random.split(key, 3)

    input_ids = jax.random.randint(k_ids, (batch, seq_len), 0, vocab_size,
                                   jnp.int32)
    attention_mask = (
        jax.random.uniform(k_mask, (batch, seq_len)) > 0.2).astype(jnp.int32)

    emb_table, conv_params, fc_w, fc_b = make_params(
        k_params, vocab_size, embedding_dim, num_filters, filter_sizes,
        num_classes)

    # Fused kernel: ids/mask in, logits out (embedding gather happens inside).
    logits = cnn_classifier_pallas(input_ids, attention_mask, emb_table,
                                   conv_params, fc_w, fc_b, filter_sizes,
                                   num_classes, batch_tile=8)
    logits = jax.block_until_ready(logits)

    # Reference path ("BERT" stand-in -> CNNClassifier in plain f32 JAX).
    embeddings = synthetic_bert_last_hidden_state(emb_table, input_ids,
                                                  attention_mask)
    ref = reference_forward(embeddings, conv_params, fc_w, fc_b, filter_sizes)

    assert logits.shape == (batch, num_classes)
    # bf16 MXU operands (f32 accumulation) vs. an all-f32 reference.
    assert jnp.allclose(logits, ref, atol=1e-2, rtol=1e-2), (
        float(jnp.max(jnp.abs(logits - ref))))

    print("KERNEL_OK")
</pallas_src>

<mosaic_0001>
module attributes {stable_mosaic.version = 11 : i64} {
  func.func @kernel(%arg0: i32, %arg1: memref<256xi32, #tpu.memory_space<smem>>, %arg2: memref<51x32xf32, #tpu.memory_space<any>>, %arg3: memref<128x128xbf16, #tpu.memory_space<vmem>>, %arg4: memref<128x128xf32, #tpu.memory_space<vmem>>, %arg5: memref<128x128xbf16, #tpu.memory_space<vmem>>, %arg6: memref<1x128xf32, #tpu.memory_space<vmem>>, %arg7: memref<8x128xf32, #tpu.memory_space<vmem>>, %arg8: memref<128x32xf32, #tpu.memory_space<vmem>>, %arg9: memref<128x128xbf16, #tpu.memory_space<vmem>>, %arg10: memref<!tpu.dma_semaphore, #tpu.memory_space<semaphore_mem>>) attributes {dimension_semantics = [#tpu.dimension_semantics<parallel>], iteration_bounds = array<i64: 2>, scalar_prefetch = 1 : i64, scratch_operands = 3 : i64, tpu.core_type = #tpu.core_type<tc>, window_params = [{}, {pipeline_mode = #tpu.pipeline_mode<synchronous>, transform_indices = @transform_1, window_bounds = array<i64: 128, 128>}, {pipeline_mode = #tpu.pipeline_mode<synchronous>, transform_indices = @transform_2, window_bounds = array<i64: 128, 128>}, {pipeline_mode = #tpu.pipeline_mode<synchronous>, transform_indices = @transform_3, window_bounds = array<i64: 128, 128>}, {pipeline_mode = #tpu.pipeline_mode<synchronous>, transform_indices = @transform_4, window_bounds = array<i64: 1, 128>}, {transform_indices = @transform_5, window_bounds = array<i64: 8, 128>}]} {
    %c128_i32 = arith.constant 128 : i32
    %0 = arith.muli %arg0, %c128_i32 : i32
    %c0_i32 = arith.constant 0 : i32
    %c128_i32_0 = arith.constant 128 : i32
    %1 = arith.addi %c0_i32, %c128_i32_0 : i32
    %c1_i32 = arith.constant 1 : i32
    scf.for %arg11 = %c0_i32 to %1 step %c1_i32  : i32 {
      %37 = arith.addi %0, %arg11 : i32
      %38 = arith.index_cast %37 : i32 to index
      %39 = memref.load %arg1[%38] : memref<256xi32, #tpu.memory_space<smem>>
      %c0_i32_33 = arith.constant 0 : i32
      %40 = tpu.memref_slice %arg2[%39, %c0_i32_33] : memref<51x32xf32, #tpu.memory_space<any>> -> memref<1x32xf32, #tpu.memory_space<any>>
      %c0_i32_34 = arith.constant 0 : i32
      %41 = tpu.memref_slice %arg8[%arg11, %c0_i32_34] : memref<128x32xf32, #tpu.memory_space<vmem>> -> memref<1x32xf32, #tpu.memory_space<vmem>>
      tpu.enqueue_dma source(%40 : memref<1x32xf32, #tpu.memory_space<any>>) target(%41 : memref<1x32xf32, #tpu.memory_space<vmem>>) target_semaphore(%arg10 : memref<!tpu.dma_semaphore, #tpu.memory_space<semaphore_mem>>)
      %c8_i32_35 = arith.constant 8 : i32
      %42 = arith.cmpi sge, %arg11, %c8_i32_35 : i32
      %43 = arith.extui %42 : i1 to i32
      %c0_i32_36 = arith.constant 0 : i32
      %44 = arith.cmpi ne, %43, %c0_i32_36 : i32
      scf.if %44 {
        %c0_i32_37 = arith.constant 0 : i32
        %c0_i32_38 = arith.constant 0 : i32
        %45 = tpu.memref_slice %arg2[%c0_i32_37, %c0_i32_38] : memref<51x32xf32, #tpu.memory_space<any>> -> memref<1x32xf32, #tpu.memory_space<any>>
        %c0_i32_39 = arith.constant 0 : i32
        %c0_i32_40 = arith.constant 0 : i32
        %46 = tpu.memref_slice %arg8[%c0_i32_39, %c0_i32_40] : memref<128x32xf32, #tpu.memory_space<vmem>> -> memref<1x32xf32, #tpu.memory_space<vmem>>
        tpu.wait_dma2 semaphore(%arg10 : memref<!tpu.dma_semaphore, #tpu.memory_space<semaphore_mem>>) src(%45 : memref<1x32xf32, #tpu.memory_space<any>>) dst(%46 : memref<1x32xf32, #tpu.memory_space<vmem>>)
      } else {
      }
    }
    %c128_i32_1 = arith.constant 128 : i32
    %c0_i32_2 = arith.constant 0 : i32
    %c8_i32 = arith.constant 8 : i32
    %2 = arith.addi %c0_i32_2, %c8_i32 : i32
    %c1_i32_3 = arith.constant 1 : i32
    scf.for %arg11 = %c0_i32_2 to %2 step %c1_i32_3  : i32 {
      %c0_i32_33 = arith.constant 0 : i32
      %c0_i32_34 = arith.constant 0 : i32
      %37 = tpu.memref_slice %arg2[%c0_i32_33, %c0_i32_34] : memref<51x32xf32, #tpu.memory_space<any>> -> memref<1x32xf32, #tpu.memory_space<any>>
      %c0_i32_35 = arith.constant 0 : i32
      %c0_i32_36 = arith.constant 0 : i32
      %38 = tpu.memref_slice %arg8[%c0_i32_35, %c0_i32_36] : memref<128x32xf32, #tpu.memory_space<vmem>> -> memref<1x32xf32, #tpu.memory_space<vmem>>
      tpu.wait_dma2 semaphore(%arg10 : memref<!tpu.dma_semaphore, #tpu.memory_space<semaphore_mem>>) src(%37 : memref<1x32xf32, #tpu.memory_space<any>>) dst(%38 : memref<1x32xf32, #tpu.memory_space<vmem>>)
    }
    %cst = arith.constant 0.000000e+00 : bf16
    %3 = vector.broadcast %cst : bf16 to vector<128x128xbf16>
    %c0 = arith.constant 0 : index
    %c0_4 = arith.constant 0 : index
    %4 = vector.load %arg9[%c0, %c0_4] : memref<128x128xbf16, #tpu.memory_space<vmem>>, vector<128x128xbf16>
    tpu.vector_store %arg9[%c0, %c0_4], %3 {strides = array<i32>} : memref<128x128xbf16, #tpu.memory_space<vmem>>, vector<128x128xbf16>,
    %c0_5 = arith.constant 0 : index
    %c0_6 = arith.constant 0 : index
    %5 = vector.load %arg8[%c0_5, %c0_6] : memref<128x32xf32, #tpu.memory_space<vmem>>, vector<128x32xf32>
    %6 = arith.truncf %5 : vector<128x32xf32> to vector<128x32xbf16>
    %c0_7 = arith.constant 0 : index
    %c0_8 = arith.constant 0 : index
    %7 = vector.load %arg9[%c0_7, %c0_8] : memref<128x128xbf16, #tpu.memory_space<vmem>>, vector<128x32xbf16>
    tpu.vector_store %arg9[%c0_7, %c0_8], %6 {strides = array<i32>} : memref<128x128xbf16, #tpu.memory_space<vmem>>, vector<128x32xbf16>,
    %c1 = arith.constant 1 : index
    %c0_9 = arith.constant 0 : index
    %8 = vector.load %arg8[%c1, %c0_9] : memref<128x32xf32, #tpu.memory_space<vmem>>, vector<127x32xf32>
    %9 = arith.truncf %8 : vector<127x32xf32> to vector<127x32xbf16>
    %c0_10 = arith.constant 0 : index
    %c32 = arith.constant 32 : index
    %10 = vector.load %arg9[%c0_10, %c32] : memref<128x128xbf16, #tpu.memory_space<vmem>>, vector<127x32xbf16>
    tpu.vector_store %arg9[%c0_10, %c32], %9 {strides = array<i32>} : memref<128x128xbf16, #tpu.memory_space<vmem>>, vector<127x32xbf16>,
    %c2 = arith.constant 2 : index
    %c0_11 = arith.constant 0 : index
    %11 = vector.load %arg8[%c2, %c0_11] : memref<128x32xf32, #tpu.memory_space<vmem>>, vector<126x32xf32>
    %12 = arith.truncf %11 : vector<126x32xf32> to vector<126x32xbf16>
    %c0_12 = arith.constant 0 : index
    %c64 = arith.constant 64 : index
    %13 = vector.load %arg9[%c0_12, %c64] : memref<128x128xbf16, #tpu.memory_space<vmem>>, vector<126x32xbf16>
    tpu.vector_store %arg9[%c0_12, %c64], %12 {strides = array<i32>} : memref<128x128xbf16, #tpu.memory_space<vmem>>, vector<126x32xbf16>,
    %c3 = arith.constant 3 : index
    %c0_13 = arith.constant 0 : index
    %14 = vector.load %arg8[%c3, %c0_13] : memref<128x32xf32, #tpu.memory_space<vmem>>, vector<125x32xf32>
    %15 = arith.truncf %14 : vector<125x32xf32> to vector<125x32xbf16>
    %c0_14 = arith.constant 0 : index
    %c96 = arith.constant 96 : index
    %16 = vector.load %arg9[%c0_14, %c96] : memref<128x128xbf16, #tpu.memory_space<vmem>>, vector<125x32xbf16>
    tpu.vector_store %arg9[%c0_14, %c96], %15 {strides = array<i32>} : memref<128x128xbf16, #tpu.memory_space<vmem>>, vector<125x32xbf16>,
    %c0_15 = arith.constant 0 : index
    %c0_16 = arith.constant 0 : index
    %17 = vector.load %arg9[%c0_15, %c0_16] : memref<128x128xbf16, #tpu.memory_space<vmem>>, vector<128x128xbf16>
    %c0_17 = arith.constant 0 : index
    %c0_18 = arith.constant 0 : index
    %18 = vector.load %arg3[%c0_17, %c0_18] : memref<128x128xbf16, #tpu.memory_space<vmem>>, vector<128x128xbf16>
    %cst_19 = arith.constant dense<0.000000e+00> : vector<128x128xf32>
    %19 = tpu.matmul %17, %18, %cst_19 {dimension_numbers = #tpu.dot_dimension_numbers<[1], [0], [0], [1], [0, 0, 1, 1], [], []>} : vector<128x128xbf16>, vector<128x128xbf16>, vector<128x128xf32> -> vector<128x128xf32>
    %c0_20 = arith.constant 0 : index
    %c0_21 = arith.constant 0 : index
    %20 = vector.load %arg4[%c0_20, %c0_21] : memref<128x128xf32, #tpu.memory_space<vmem>>, vector<128x128xf32>
    %cst_22 = arith.constant -1.000000e+29 : f32
    %21 = vector.broadcast %cst_22 : f32 to vector<128x128xf32>
    %22 = arith.cmpf ogt, %20, %21 : vector<128x128xf32>
    %23 = arith.addf %19, %20 : vector<128x128xf32>
    %cst_23 = arith.constant -1.000000e+30 : f32
    %24 = vector.broadcast %cst_23 : f32 to vector<128x128xf32>
    %25 = arith.select %22, %23, %24 : vector<128x128xi1>, vector<128x128xf32>
    %26 = vector.shape_cast %25 : vector<128x128xf32> to vector<8x16x128xf32>
    %cst_24 = arith.constant dense<0xFF800000> : vector<8x128xf32>
    %27 = vector.multi_reduction <maximumf>, %26, %cst_24 [1] : vector<8x16x128xf32> to vector<8x128xf32>
    %cst_25 = arith.constant 0.000000e+00 : f32
    %28 = vector.broadcast %cst_25 : f32 to vector<8x128xf32>
    %29 = arith.maximumf %27, %28 : vector<8x128xf32>
    %30 = arith.truncf %29 : vector<8x128xf32> to vector<8x128xbf16>
    %c0_26 = arith.constant 0 : index
    %c0_27 = arith.constant 0 : index
    %31 = vector.load %arg5[%c0_26, %c0_27] : memref<128x128xbf16, #tpu.memory_space<vmem>>, vector<128x128xbf16>
    %cst_28 = arith.constant dense<0.000000e+00> : vector<8x128xf32>
    %32 = tpu.matmul %30, %31, %cst_28 {dimension_numbers = #tpu.dot_dimension_numbers<[1], [0], [0], [1], [0, 0, 1, 1], [], []>} : vector<8x128xbf16>, vector<128x128xbf16>, vector<8x128xf32> -> vector<8x128xf32>
    %c0_29 = arith.constant 0 : index
    %c0_30 = arith.constant 0 : index
    %33 = vector.load %arg6[%c0_29, %c0_30] : memref<1x128xf32, #tpu.memory_space<vmem>>, vector<1x128xf32>
    %34 = vector.broadcast %33 : vector<1x128xf32> to vector<8x128xf32>
    %35 = arith.addf %32, %34 : vector<8x128xf32>
    %c0_31 = arith.constant 0 : index
    %c0_32 = arith.constant 0 : index
    %36 = vector.load %arg7[%c0_31, %c0_32] : memref<8x128xf32, #tpu.memory_space<vmem>>, vector<8x128xf32>
    tpu.vector_store %arg7[%c0_31, %c0_32], %35 {strides = array<i32>} : memref<8x128xf32, #tpu.memory_space<vmem>>, vector<8x128xf32>,
    return
  }
  func.func @transform_1(%arg0: i32, %arg1: memref<256xi32, #tpu.memory_space<smem>>) -> (i32, i32) {
    %c0_i32 = arith.constant 0 : i32
    %c0_i32_0 = arith.constant 0 : i32
    %c0_i32_1 = arith.constant 0 : i32
    return %c0_i32, %c0_i32_0 : i32, i32
  }
  func.func @transform_2(%arg0: i32, %arg1: memref<256xi32, #tpu.memory_space<smem>>) -> (i32, i32) {
    %c0_i32 = arith.constant 0 : i32
    %c0_i32_0 = arith.constant 0 : i32
    %c0_i32_1 = arith.constant 0 : i32
    return %c0_i32, %c0_i32_0 : i32, i32
  }
  func.func @transform_3(%arg0: i32, %arg1: memref<256xi32, #tpu.memory_space<smem>>) -> (i32, i32) {
    %c0_i32 = arith.constant 0 : i32
    %c0_i32_0 = arith.constant 0 : i32
    %c0_i32_1 = arith.constant 0 : i32
    return %c0_i32, %c0_i32_0 : i32, i32
  }
  func.func @transform_4(%arg0: i32, %arg1: memref<256xi32, #tpu.memory_space<smem>>) -> (i32, i32) {
    %c0_i32 = arith.constant 0 : i32
    %c0_i32_0 = arith.constant 0 : i32
    %c0_i32_1 = arith.constant 0 : i32
    return %c0_i32, %c0_i32_0 : i32, i32
  }
  func.func @transform_5(%arg0: i32, %arg1: memref<256xi32, #tpu.memory_space<smem>>) -> (i32, i32) {
    %c0_i32 = arith.constant 0 : i32
    %c0_i32_0 = arith.constant 0 : i32
    return %arg0, %c0_i32 : i32, i32
  }
}

</mosaic_0001>

<llo_original>
// kernel: tpu_custom_call.1
$region0: #{tpu_custom_call.1}
  #allocation0 [shape = 'u32[]', space=smem, size = 0x4, offset = 0x4, fixed_abs, tag = 'smem constant byte address 0x4 - core index']
  #allocation1 [shape = 'u32[144,128]{1,0:T(1,128)}', space=vmem, size = 0x12000, scoped, tag = 'internal scratch']
  #allocation2 [shape = 'f32[128,32]{1,0:T(8,128)}', space=vmem, size = 0x10000, scoped, tag = 'scratch operand']
  #allocation3 [shape = 'bf16[128,128]{1,0:T(8,128)(2,1)}', space=vmem, size = 0x8000, scoped, tag = 'scratch operand']
  #allocation4 [shape = 's32[1]{0}', space=sflag, size = 0x4, scoped, tag = 'scratch operand']
  #allocation5 [shape = 's32[1]{0}', space=sflag, size = 0x4, scoped, tag = 'scoped memory for tpu_custom_call.1']
  #allocation6 [shape = 'u8[1024]{0}', space=smem, size = 0x400, scoped, tag = 'prefetched SMEM operand 0']
  #allocation13 [shape = 's32[]', space=sflag, size = 0x4, offset = 0, fixed_abs, tag = 'sflag constant byte address 0x0 - dummy sync flag']
  %s0 = inlined_call_operand.vmem [shape: s32[256], index: 0, kind: input, shape index: {}]
  %s1 = inlined_call_operand.vmem [shape: f32[51,32], index: 1, kind: input, shape index: {}]
  %s2 = inlined_call_operand.vmem [shape: bf16[128,128], index: 2, kind: input, shape index: {}]
  %s3 = inlined_call_operand.hbm [shape: f32[128,128], index: 3, kind: input, shape index: {}]
  %s4 = inlined_call_operand.hbm [shape: bf16[128,128], index: 4, kind: input, shape index: {}]
  %s5 = inlined_call_operand.vmem [shape: f32[1,128], index: 5, kind: input, shape index: {}]
  %s6 = inlined_call_operand.hbm [shape: f32[16,128], index: 6, kind: output, shape index: {}]
  %s7 = sld [smem:[#allocation0]]
  $region105: #{tpu_custom_call.1} parent=0
    _
  %s9 = ssub.s32 1, %s7
  %s10 = scalar_select 0, %s9, %s7
  %s11 = sshll.u32 %s0, 4
  %s12 = int_to_ptr.vmem [resolvable:$true] %s11
  %14 = dma.vmem_to_smem %s12, 32, [#allocation6], [#allocation5]
  %15 = dma.done [#allocation5], 32
  %16 = sfence
  $region1: #{tpu_custom_call.1} parent=0
    #allocation7 [shape = 'u8[65536]{0}', space=vmem, size = 0x10000, scoped, tag = 'input window, operand 3, single buffered']
    #allocation8 [shape = 's32[2]{0}', space=sflag, size = 0x8, scoped, tag = 'scoped memory for tpu_custom_call.1']
    #allocation9 [shape = 's32[2]{0}', space=sflag, size = 0x8, scoped, tag = 'scoped memory for tpu_custom_call.1']
    #allocation10 [shape = 'u8[32768]{0}', space=vmem, size = 0x8000, scoped, tag = 'input window, operand 4, single buffered']
    #allocation11 [shape = 's32[1]{0}', space=sflag, size = 0x4, scoped, tag = 'scoped memory for tpu_custom_call.1']
    #allocation12 [shape = 'u8[8192]{0}', space=vmem, size = 0x2000, scoped, tag = 'output window, operand 0']
    %17 = vsyncpa [#allocation8], 0
    %18 = vsyncpa [#allocation11], 0
    %19 = vsyncpa [#allocation9], 0
    %s20 = scalar_lea.sflag [#allocation9], 1
    %21 = vsyncpa %s20, 0
    loop: start=0, step=1, limit=4
    $region2: #{tpu_custom_call.1} parent=1 // loop_pre_header
      _
    $region3: #{tpu_custom_call.1} parent=1 // loop_header
      %s23 = sphi 0, %s27
      %p24 = scmp.ge.s32.totalorder %s23, 4
      %s31 = sphi 0, %s31
      %s33 = sphi 0, %s31
      %s34 = sphi 0, %s33
      %s48 = sphi 0, %s34
      %s52 = sphi 0, %s52
      %s54 = sphi 0, %s52
      %s55 = sphi 0, %s54
      %s69 = sphi 0, %s55
      %s73 = sphi 0, %s73
      %s75 = sphi 0, %s73
      %s76 = sphi 0, %s75
      %s90 = sphi 0, %s76
      %s94 = sphi 0, %s94
      %s96 = sphi 0, %s94
      %s97 = sphi 0, %s96
      %s111 = sphi 0, %s97
      %s117 = sphi 0, %s119
      %s120 = sphi 0, %s117
      %s121 = sphi 0, %s120
      %s137 = sphi 0, %s121
    $region4: #{tpu_custom_call.1} parent=1 // loop_header_branch
      %26 = sbr.rel (%p24) target = $region8
    $region5: #{tpu_custom_call.1} parent=1 // loop_body
      %s28 = ssub.s32 %s23, 1
      %s29 = ssub.s32 %s23, 2
      %s30 = sadd.s32 %s23, 1
      %s32 = sadd.s32 %s31, 1
      %p35 = scmp.eq.s32.totalorder %s23, 1
      %p36 = scmp.ne.s32.totalorder %s31, %s33
      %p37 = scmp.eq.s32.totalorder %s23, 0
      %p38 = por %p36, %p37
      %p39 = scmp.ne.s32.totalorder %s31, %s33
      %p40 = scmp.eq.s32.totalorder %s28, 1
      %p41 = por %p39, %p40
      %p42 = scmp.ne.s32.totalorder %s33, %s34
      %p43 = scmp.eq.s32.totalorder %s28, 0
      %p44 = por %p42, %p43
      %p45 = scmp.ne.s32.totalorder %s33, %s34
      %p46 = scmp.eq.s32.totalorder %s29, 1
      %p47 = por %p45, %p46
      %p49 = scmp.ne.s32.totalorder %s34, %s48
      %p50 = scmp.eq.s32.totalorder %s29, 0
      %p51 = por %p49, %p50
      %s53 = sadd.s32 %s52, 1
      %p56 = scmp.eq.s32.totalorder %s23, 1
      %p57 = scmp.ne.s32.totalorder %s52, %s54
      %p58 = scmp.eq.s32.totalorder %s23, 0
      %p59 = por %p57, %p58
      %p60 = scmp.ne.s32.totalorder %s52, %s54
      %p61 = scmp.eq.s32.totalorder %s28, 1
      %p62 = por %p60, %p61
      %p63 = scmp.ne.s32.totalorder %s54, %s55
      %p64 = scmp.eq.s32.totalorder %s28, 0
      %p65 = por %p63, %p64
      %p66 = scmp.ne.s32.totalorder %s54, %s55
      %p67 = scmp.eq.s32.totalorder %s29, 1
      %p68 = por %p66, %p67
      %p70 = scmp.ne.s32.totalorder %s55, %s69
      %p71 = scmp.eq.s32.totalorder %s29, 0
      %p72 = por %p70, %p71
      %s74 = sadd.s32 %s73, 1
      %p77 = scmp.eq.s32.totalorder %s23, 1
      %p78 = scmp.ne.s32.totalorder %s73, %s75
      %p79 = scmp.eq.s32.totalorder %s23, 0
      %p80 = por %p78, %p79
      %p81 = scmp.ne.s32.totalorder %s73, %s75
      %p82 = scmp.eq.s32.totalorder %s28, 1
      %p83 = por %p81, %p82
      %p84 = scmp.ne.s32.totalorder %s75, %s76
      %p85 = scmp.eq.s32.totalorder %s28, 0
      %p86 = por %p84, %p85
      %p87 = scmp.ne.s32.totalorder %s75, %s76
      %p88 = scmp.eq.s32.totalorder %s29, 1
      %p89 = por %p87, %p88
      %p91 = scmp.ne.s32.totalorder %s76, %s90
      %p92 = scmp.eq.s32.totalorder %s29, 0
      %p93 = por %p91, %p92
      %s95 = sadd.s32 %s94, 1
      %p98 = scmp.eq.s32.totalorder %s23, 1
      %p99 = scmp.ne.s32.totalorder %s94, %s96
      %p100 = scmp.eq.s32.totalorder %s23, 0
      %p101 = por %p99, %p100
      %p102 = scmp.ne.s32.totalorder %s94, %s96
      %p103 = scmp.eq.s32.totalorder %s28, 1
      %p104 = por %p102, %p103
      %p105 = scmp.ne.s32.totalorder %s96, %s97
      %p106 = scmp.eq.s32.totalorder %s28, 0
      %p107 = por %p105, %p106
      %p108 = scmp.ne.s32.totalorder %s96, %s97
      %p109 = scmp.eq.s32.totalorder %s29, 1
      %p110 = por %p108, %p109
      %p112 = scmp.ne.s32.totalorder %s97, %s111
      %p113 = scmp.eq.s32.totalorder %s29, 0
      %p114 = por %p112, %p113
      %s115 = ssub.s32 %s23, %s30
      %p116 = scmp.eq.s32.totalorder %s115, 0
      %s118 = sadd.s32 %s117, 1
      %s119 = scalar_select %p116, %s117, %s118
      %p122 = pneg %p116
      %p123 = scmp.eq.s32.totalorder %s23, 1
      %p124 = por %p122, %p123
      %p125 = scmp.ne.s32.totalorder %s117, %s120
      %p126 = scmp.eq.s32.totalorder %s23, 0
      %p127 = por %p125, %p126
      %p128 = scmp.ne.s32.totalorder %s117, %s120
      %p129 = scmp.eq.s32.totalorder %s28, 1
      %p130 = por %p128, %p129
      %p131 = scmp.ne.s32.totalorder %s120, %s121
      %p132 = scmp.eq.s32.totalorder %s28, 0
      %p133 = por %p131, %p132
      %p134 = scmp.ne.s32.totalorder %s120, %s121
      %p135 = scmp.eq.s32.totalorder %s29, 1
      %p136 = por %p134, %p135
      %p138 = scmp.ne.s32.totalorder %s121, %s137
      %p139 = scmp.eq.s32.totalorder %s29, 0
      %p140 = por %p138, %p139
      %p141 = scmp.le.s32.totalorder 1, %s23
      %p142 = scmp.lt.s32.totalorder %s23, 3
      %p143 = pnand %p141, %p142
      %p144 = pneg %p143
      // Predicated region
      $region9: #{tpu_custom_call.1} parent=5 // pred_check
        _
      $region10: #{tpu_custom_call.1} parent=5 // pred_check_branch
        %146 = sbr.rel (%p143) target = $region12
      $region11: #{tpu_custom_call.1} parent=5 // pred_region
        %s147 = ssub.s32 %s23, 1
        // Predicated region
        $region13: #{tpu_custom_call.1} parent=11 // pred_check
          %p148 = pneg %p44
        $region14: #{tpu_custom_call.1} parent=11 // pred_check_branch
          %150 = sbr.rel (%p148) target = $region16
        $region15: #{tpu_custom_call.1} parent=11 // pred_region
          _
        $region16: #{tpu_custom_call.1} parent=11 // pred_fallthru
          _
        // Predicated region
        $region17: #{tpu_custom_call.1} parent=11 // pred_check
          %p151 = pneg %p65
        $region18: #{tpu_custom_call.1} parent=11 // pred_check_branch
          %153 = sbr.rel (%p151) target = $region20
        $region19: #{tpu_custom_call.1} parent=11 // pred_region
          %s155 = ssub.s32 2048, 2048
          %156 = vsyncadd [#allocation8], %s155
          %s157 = sshll.u32 [#allocation7], 4
          %s158 = int_to_ptr.vmem [resolvable:$true] %s157
          %163 = dma.hbm_to_vmem [thread:$0]  %s3, 2048, %s158, [#allocation8], 128, 128, 8
        $region20: #{tpu_custom_call.1} parent=11 // pred_fallthru
          _
        // Predicated region
        $region21: #{tpu_custom_call.1} parent=11 // pred_check
          %p164 = pneg %p86
        $region22: #{tpu_custom_call.1} parent=11 // pred_check_branch
          %166 = sbr.rel (%p164) target = $region24
        $region23: #{tpu_custom_call.1} parent=11 // pred_region
          %s168 = ssub.s32 1024, 1024
          %169 = vsyncadd [#allocation11], %s168
          %s170 = sshll.u32 [#allocation10], 4
          %s171 = int_to_ptr.vmem [resolvable:$true] %s170
          %176 = dma.hbm_to_vmem [thread:$0]  %s4, 1024, %s171, [#allocation11], 64, 64, 4
        $region24: #{tpu_custom_call.1} parent=11 // pred_fallthru
          _
        // Predicated region
        $region25: #{tpu_custom_call.1} parent=11 // pred_check
          %p177 = pneg %p107
        $region26: #{tpu_custom_call.1} parent=11 // pred_check_branch
          %179 = sbr.rel (%p177) target = $region28
        $region27: #{tpu_custom_call.1} parent=11 // pred_region
          _
        $region28: #{tpu_custom_call.1} parent=11 // pred_fallthru
          _
      $region12: #{tpu_custom_call.1} parent=5 // pred_fallthru
        _
      %p180 = scmp.lt.s32.totalorder %s23, 2
      // Predicated region
      $region29: #{tpu_custom_call.1} parent=5 // pred_check
        %p181 = pneg %p180
      $region30: #{tpu_custom_call.1} parent=5 // pred_check_branch
        %183 = sbr.rel (%p181) target = $region32
      $region31: #{tpu_custom_call.1} parent=5 // pred_region
        _
      $region32: #{tpu_custom_call.1} parent=5 // pred_fallthru
        _
      %p184 = scmp.le.s32.totalorder 1, %s23
      %p185 = scmp.lt.s32.totalorder %s23, 3
      %p186 = pnand %p184, %p185
      %p187 = pneg %p186
      // Predicated region
      $region33: #{tpu_custom_call.1} parent=5 // pred_check
        _
      $region34: #{tpu_custom_call.1} parent=5 // pred_check_branch
        %189 = sbr.rel (%p186) target = $region36
      $region35: #{tpu_custom_call.1} parent=5 // pred_region
        %s190 = ssub.s32 %s23, 1
        // Predicated region
        $region37: #{tpu_custom_call.1} parent=35 // pred_check
          %p191 = pneg %p65
        $region38: #{tpu_custom_call.1} parent=35 // pred_check_branch
          %193 = sbr.rel (%p191) target = $region40
        $region39: #{tpu_custom_call.1} parent=35 // pred_region
          %194 = dma.done [#allocation8], 2048
        $region40: #{tpu_custom_call.1} parent=35 // pred_fallthru
          _
        // Predicated region
        $region41: #{tpu_custom_call.1} parent=35 // pred_check
          %p195 = pneg %p86
        $region42: #{tpu_custom_call.1} parent=35 // pred_check_branch
          %197 = sbr.rel (%p195) target = $region44
        $region43: #{tpu_custom_call.1} parent=35 // pred_region
          %198 = dma.done [#allocation11], 1024
        $region44: #{tpu_custom_call.1} parent=35 // pred_fallthru
          _
        %p199 = pneg %p44
        %p200 = pneg %p41
        %p201 = pneg %p65
        %p202 = pneg %p62
        %p203 = pneg %p86
        %p204 = pneg %p83
        %p205 = pneg %p107
        %p206 = pneg %p104
        %p207 = pneg %p133
        %p208 = pneg %p130
        %s209 = sand.u32 %s120, 1
        %s210 = scalar_lea.sflag [#allocation9], %s209
        %s211 = sand.u32 %s120, 1
        %s212 = smul.addr %s211, 8
        %s213 = scalar_lea.vmem [#allocation12], %s212
        %s215 = smul.u32 %s28, 128
        loop: start=0, step=1, limit=128
        $region45: #{tpu_custom_call.1} parent=35 // loop_pre_header
          _
        $region46: #{tpu_custom_call.1} parent=35 // loop_header
          %s217 = sphi 0, %s221
          %p218 = scmp.ge.s32.totalorder %s217, 128
        $region47: #{tpu_custom_call.1} parent=35 // loop_header_branch
          %220 = sbr.rel (%p218) target = $region51
        $region48: #{tpu_custom_call.1} parent=35 // loop_body
          %s222 = sadd.s32 %s215, %s217
          %s223 = sld [smem:[#allocation6 + %s222]]
          %s224 = scalar_lea.vmem %s1, %s223
          %s225 = scalar_lea.vmem [#allocation2], %s217
          %p227 = scmp.lt.u32.totalorder 1, 8
          %p228 = pneg %p227
          // Predicated region
          $region52: #{tpu_custom_call.1} parent=48 // pred_check
            _
          $region53: #{tpu_custom_call.1} parent=48 // pred_check_branch
            %230 = sbr.rel (%p227) target = $region55
          $region54: #{tpu_custom_call.1} parent=48 // pred_region
            %s246 = sand.u32 1, 7
            %p247 = scmp.eq.s32.totalorder %s246, 0
            %p248 = pneg %p247
            // Predicated region
            $region67: #{tpu_custom_call.1} parent=54 // pred_check
              _
            $region68: #{tpu_custom_call.1} parent=54 // pred_check_branch
              %250 = sbr.rel (%p247) target = $region70
            $region69: #{tpu_custom_call.1} parent=54 // pred_region
              %s251 = sand.u32 1, 7
              %s252 = ssub.s32 1, %s251
              %s253 = scalar_lea.vmem %s224, %s252
              %s254 = ssub.s32 1, %s251
              %s255 = scalar_lea.vmem %s225, %s254 [#allocation2]
              %s256 = sshll.u32 1, %s251
              %s257 = ssub.s32 %s256, 1
              loop: start=0, step=1, limit=1
              $region71: #{tpu_custom_call.1} parent=69 // loop_pre_header
                _
              $region72: #{tpu_custom_call.1} parent=69 // loop_header
                %s259 = sphi 0, %s263
                %p260 = scmp.ge.s32.totalorder %s259, 1
                %s264 = sphi %s253, %s253
                %s265 = sphi %s255, %s255
              $region73: #{tpu_custom_call.1} parent=69 // loop_header_branch
                %262 = sbr.rel (%p260) target = $region77
              $region74: #{tpu_custom_call.1} parent=69 // loop_body
                %v266 = vld [vmem:[%s264] sm:%s257]
                %267 = vst [vmem:[%s265] sm:%s257] %v266
              $region75: #{tpu_custom_call.1} parent=69 // loop_footer
                %s263 = sadd.s32 1, %s259
              $region76: #{tpu_custom_call.1} parent=69 // loop_footer_branch
                %258 = sbr.rel target = $region72
              $region77: #{tpu_custom_call.1} parent=69 // loop_exit
                _
            $region70: #{tpu_custom_call.1} parent=54 // pred_fallthru
              _
          $region55: #{tpu_custom_call.1} parent=48 // pred_fallthru
            _
          // Predicated region
          $region56: #{tpu_custom_call.1} parent=48 // pred_check
            %p231 = pneg %p227
          $region57: #{tpu_custom_call.1} parent=48 // pred_check_branch
            %233 = sbr.rel (%p231) target = $region59
          $region58: #{tpu_custom_call.1} parent=48 // pred_region
            %s234 = sshll.u32 1, 1
            %s235 = ssub.s32 %s234, 1
            loop: start=0, step=1, limit=1
            $region60: #{tpu_custom_call.1} parent=58 // loop_pre_header
              _
            $region61: #{tpu_custom_call.1} parent=58 // loop_header
              %s237 = sphi 0, %s241
              %p238 = scmp.ge.s32.totalorder %s237, 1
              %s242 = sphi %s224, %s224
              %s243 = sphi %s225, %s225
            $region62: #{tpu_custom_call.1} parent=58 // loop_header_branch
              %240 = sbr.rel (%p238) target = $region66
            $region63: #{tpu_custom_call.1} parent=58 // loop_body
              %v244 = vld [vmem:[%s242] sm:%s235]
              %245 = vst [vmem:[%s243] sm:%s235] %v244
            $region64: #{tpu_custom_call.1} parent=58 // loop_footer
              %s241 = sadd.s32 1, %s237
            $region65: #{tpu_custom_call.1} parent=58 // loop_footer_branch
              %236 = sbr.rel target = $region61
            $region66: #{tpu_custom_call.1} parent=58 // loop_exit
              _
          $region59: #{tpu_custom_call.1} parent=48 // pred_fallthru
            _
          // Predicated region
          $region78: #{tpu_custom_call.1} parent=48 // pred_check
            _
          $region79: #{tpu_custom_call.1} parent=48 // pred_check_branch
            %270 = sbr.rel (0) target = $region81
          $region80: #{tpu_custom_call.1} parent=48 // pred_region
            %271 = vsyncadd [#allocation4], 16
          $region81: #{tpu_custom_call.1} parent=48 // pred_fallthru
            _
          %p272 = scmp.ge.s32.totalorder %s217, 8
          // Predicated region
          $region82: #{tpu_custom_call.1} parent=48 // pred_check
            %p273 = pneg %p272
          $region83: #{tpu_custom_call.1} parent=48 // pred_check_branch
            %275 = sbr.rel (%p273) target = $region85
          $region84: #{tpu_custom_call.1} parent=48 // pred_region
            %s276 = smul.u32 1, 1
            %s277 = sshll.u32 %s276, 4
            %278 = dma.done [#allocation4], %s277
          $region85: #{tpu_custom_call.1} parent=48 // pred_fallthru
            _
        $region49: #{tpu_custom_call.1} parent=35 // loop_footer
          %s221 = sadd.s32 1, %s217
        $region50: #{tpu_custom_call.1} parent=35 // loop_footer_branch
          %216 = sbr.rel target = $region46
        $region51: #{tpu_custom_call.1} parent=35 // loop_exit
          _
        loop: start=0, step=1, limit=8
        $region86: #{tpu_custom_call.1} parent=35 // loop_pre_header
          _
        $region87: #{tpu_custom_call.1} parent=35 // loop_header
          %s280 = sphi 0, %s284
          %p281 = scmp.ge.s32.totalorder %s280, 8
        $region88: #{tpu_custom_call.1} parent=35 // loop_header_branch
          %283 = sbr.rel (%p281) target = $region92
        $region89: #{tpu_custom_call.1} parent=35 // loop_body
          %s285 = smul.u32 1, 1
          %s286 = sshll.u32 %s285, 4
          %287 = dma.done [#allocation4], %s286
        $region90: #{tpu_custom_call.1} parent=35 // loop_footer
          %s284 = sadd.s32 1, %s280
        $region91: #{tpu_custom_call.1} parent=35 // loop_footer_branch
          %279 = sbr.rel target = $region87
        $region92: #{tpu_custom_call.1} parent=35 // loop_exit
          _
        %288 = vst [vmem:[#allocation3] sm:$0xf] 0
        %289 = vst [vmem:[#allocation3 + $0x4] sm:$0xf] 0
        %290 = vst [vmem:[#allocation3 + $0x8] sm:$0xf] 0
        %291 = vst [vmem:[#allocation3 + $0xc] sm:$0xf] 0
        %292 = vst [vmem:[#allocation3 + $0x10] sm:$0xf] 0
        %293 = vst [vmem:[#allocation3 + $0x14] sm:$0xf] 0
        %294 = vst [vmem:[#allocation3 + $0x18] sm:$0xf] 0
        %295 = vst [vmem:[#allocation3 + $0x1c] sm:$0xf] 0
        %296 = vst [vmem:[#allocation3 + $0x20] sm:$0xf] 0
        %297 = vst [vmem:[#allocation3 + $0x24] sm:$0xf] 0
        %298 = vst [vmem:[#allocation3 + $0x28] sm:$0xf] 0
        %299 = vst [vmem:[#allocation3 + $0x2c] sm:$0xf] 0
        %300 = vst [vmem:[#allocation3 + $0x30] sm:$0xf] 0
        %301 = vst [vmem:[#allocation3 + $0x34] sm:$0xf] 0
        %302 = vst [vmem:[#allocation3 + $0x38] sm:$0xf] 0
        %303 = vst [vmem:[#allocation3 + $0x3c] sm:$0xf] 0
        %v304 = vld [vmem:[#allocation2] sm:$0xff]
        %v305 = vld [vmem:[#allocation2 + $0x8] sm:$0xff]
        %v306 = vld [vmem:[#allocation2 + $0x10] sm:$0xff]
        %v307 = vld [vmem:[#allocation2 + $0x18] sm:$0xff]
        %v308 = vld [vmem:[#allocation2 + $0x20] sm:$0xff]
        %v309 = vld [vmem:[#allocation2 + $0x28] sm:$0xff]
        %v310 = vld [vmem:[#allocation2 + $0x30] sm:$0xff]
        %v311 = vld [vmem:[#allocation2 + $0x38] sm:$0xff]
        %v312 = vld [vmem:[#allocation2 + $0x40] sm:$0xff]
        %v313 = vld [vmem:[#allocation2 + $0x48] sm:$0xff]
        %v314 = vld [vmem:[#allocation2 + $0x50] sm:$0xff]
        %v315 = vld [vmem:[#allocation2 + $0x58] sm:$0xff]
        %v316 = vld [vmem:[#allocation2 + $0x60] sm:$0xff]
        %v317 = vld [vmem:[#allocation2 + $0x68] sm:$0xff]
        %v318 = vld [vmem:[#allocation2 + $0x70] sm:$0xff]
        %v319 = vld [vmem:[#allocation2 + $0x78] sm:$0xff]
        %v320 = vpack.c.bf16 %v305, %v304
        %v321 = vpack.c.bf16 %v307, %v306
        %v322 = vpack.c.bf16 %v309, %v308
        %v323 = vpack.c.bf16 %v311, %v310
        %v324 = vpack.c.bf16 %v313, %v312
        %v325 = vpack.c.bf16 %v315, %v314
        %v326 = vpack.c.bf16 %v317, %v316
        %v327 = vpack.c.bf16 %v319, %v318
        %v336 = vunpack.c.l.b16 %v320
        %v337 = vunpack.c.h.b16 %v320
        %v338 = vunpack.c.l.b16 %v321
        %v339 = vunpack.c.h.b16 %v321
        %v340 = vunpack.c.l.b16 %v322
        %v341 = vunpack.c.h.b16 %v322
        %v342 = vunpack.c.l.b16 %v323
        %v343 = vunpack.c.h.b16 %v323
        %v344 = vunpack.c.l.b16 %v324
        %v345 = vunpack.c.h.b16 %v324
        %v346 = vunpack.c.l.b16 %v325
        %v347 = vunpack.c.h.b16 %v325
        %v348 = vunpack.c.l.b16 %v326
        %v349 = vunpack.c.h.b16 %v326
        %v350 = vunpack.c.l.b16 %v327
        %v351 = vunpack.c.h.b16 %v327
        %v352 = vpack.c.b16 %v336, %v336
        %v353 = vpack.c.b16 %v337, %v337
        %v354 = vpack.c.b16 %v338, %v338
        %v355 = vpack.c.b16 %v339, %v339
        %v356 = vpack.c.b16 %v340, %v340
        %v357 = vpack.c.b16 %v341, %v341
        %v358 = vpack.c.b16 %v342, %v342
        %v359 = vpack.c.b16 %v343, %v343
        %v360 = vpack.c.b16 %v344, %v344
        %v361 = vpack.c.b16 %v345, %v345
        %v362 = vpack.c.b16 %v346, %v346
        %v363 = vpack.c.b16 %v347, %v347
        %v364 = vpack.c.b16 %v348, %v348
        %v365 = vpack.c.b16 %v349, %v349
        %v366 = vpack.c.b16 %v350, %v350
        %v367 = vpack.c.b16 %v351, %v351
        %vm384 = vcmask 257024
        %385 = vst.msk [vmem:[#allocation3] sm:$0xf] %vm384, %v352
        %386 = vst.msk [vmem:[#allocation3 + $0x4] sm:$0xf] %vm384, %v353
        %387 = vst.msk [vmem:[#allocation3 + $0x8] sm:$0xf] %vm384, %v354
        %388 = vst.msk [vmem:[#allocation3 + $0xc] sm:$0xf] %vm384, %v355
        %389 = vst.msk [vmem:[#allocation3 + $0x10] sm:$0xf] %vm384, %v356
        %390 = vst.msk [vmem:[#allocation3 + $0x14] sm:$0xf] %vm384, %v357
        %391 = vst.msk [vmem:[#allocation3 + $0x18] sm:$0xf] %vm384, %v358
        %392 = vst.msk [vmem:[#allocation3 + $0x1c] sm:$0xf] %vm384, %v359
        %393 = vst.msk [vmem:[#allocation3 + $0x20] sm:$0xf] %vm384, %v360
        %394 = vst.msk [vmem:[#allocation3 + $0x24] sm:$0xf] %vm384, %v361
        %395 = vst.msk [vmem:[#allocation3 + $0x28] sm:$0xf] %vm384, %v362
        %396 = vst.msk [vmem:[#allocation3 + $0x2c] sm:$0xf] %vm384, %v363
        %397 = vst.msk [vmem:[#allocation3 + $0x30] sm:$0xf] %vm384, %v364
        %398 = vst.msk [vmem:[#allocation3 + $0x34] sm:$0xf] %vm384, %v365
        %399 = vst.msk [vmem:[#allocation3 + $0x38] sm:$0xf] %vm384, %v366
        %400 = vst.msk [vmem:[#allocation3 + $0x3c] sm:$0xf] %vm384, %v367
        %v401 = vld [vmem:[#allocation2 + $0x1] sm:$0xff]
        %v402 = vld [vmem:[#allocation2 + $0x9] sm:$0xff]
        %v403 = vld [vmem:[#allocation2 + $0x11] sm:$0xff]
        %v404 = vld [vmem:[#allocation2 + $0x19] sm:$0xff]
        %v405 = vld [vmem:[#allocation2 + $0x21] sm:$0xff]
        %v406 = vld [vmem:[#allocation2 + $0x29] sm:$0xff]
        %v407 = vld [vmem:[#allocation2 + $0x31] sm:$0xff]
        %v408 = vld [vmem:[#allocation2 + $0x39] sm:$0xff]
        %v409 = vld [vmem:[#allocation2 + $0x41] sm:$0xff]
        %v410 = vld [vmem:[#allocation2 + $0x49] sm:$0xff]
        %v411 = vld [vmem:[#allocation2 + $0x51] sm:$0xff]
        %v412 = vld [vmem:[#allocation2 + $0x59] sm:$0xff]
        %v413 = vld [vmem:[#allocation2 + $0x61] sm:$0xff]
        %v414 = vld [vmem:[#allocation2 + $0x69] sm:$0xff]
        %v415 = vld [vmem:[#allocation2 + $0x71] sm:$0xff]
        %v416 = vld [vmem:[#allocation2 + $0x79] sm:$0x7f]
        %v417 = vpack.c.bf16 %v402, %v401
        %v418 = vpack.c.bf16 %v404, %v403
        %v419 = vpack.c.bf16 %v406, %v405
        %v420 = vpack.c.bf16 %v408, %v407
        %v421 = vpack.c.bf16 %v410, %v409
        %v422 = vpack.c.bf16 %v412, %v411
        %v423 = vpack.c.bf16 %v414, %v413
        %v424 = vpack.c.bf16 %v416, %v415
        %v433 = vunpack.c.l.b16 %v417
        %v434 = vunpack.c.h.b16 %v417
        %v435 = vunpack.c.l.b16 %v418
        %v436 = vunpack.c.h.b16 %v418
        %v437 = vunpack.c.l.b16 %v419
        %v438 = vunpack.c.h.b16 %v419
        %v439 = vunpack.c.l.b16 %v420
        %v440 = vunpack.c.h.b16 %v420
        %v441 = vunpack.c.l.b16 %v421
        %v442 = vunpack.c.h.b16 %v421
        %v443 = vunpack.c.l.b16 %v422
        %v444 = vunpack.c.h.b16 %v422
        %v445 = vunpack.c.l.b16 %v423
        %v446 = vunpack.c.h.b16 %v423
        %v447 = vunpack.c.l.b16 %v424
        %v448 = vunpack.c.h.b16 %v424
        %v449 = vpack.c.b16 %v433, %v433
        %v450 = vpack.c.b16 %v434, %v434
        %v451 = vpack.c.b16 %v435, %v435
        %v452 = vpack.c.b16 %v436, %v436
        %v453 = vpack.c.b16 %v437, %v437
        %v454 = vpack.c.b16 %v438, %v438
        %v455 = vpack.c.b16 %v439, %v439
        %v456 = vpack.c.b16 %v440, %v440
        %v457 = vpack.c.b16 %v441, %v441
        %v458 = vpack.c.b16 %v442, %v442
        %v459 = vpack.c.b16 %v443, %v443
        %v460 = vpack.c.b16 %v444, %v444
        %v461 = vpack.c.b16 %v445, %v445
        %v462 = vpack.c.b16 %v446, %v446
        %v463 = vpack.c.b16 %v447, %v447
        %v464 = vpack.c.b16 %v448, %v448
        %465 = vrot.lane.b32.xlu0 %v449, 32
        %v466 = vpop.permute.xlu0 %465
        %467 = vrot.lane.b32.xlu0 %v450, 32
        %v468 = vpop.permute.xlu0 %467
        %469 = vrot.lane.b32.xlu0 %v451, 32
        %v470 = vpop.permute.xlu0 %469
        %471 = vrot.lane.b32.xlu0 %v452, 32
        %v472 = vpop.permute.xlu0 %471
        %473 = vrot.lane.b32.xlu0 %v453, 32
        %v474 = vpop.permute.xlu0 %473
        %475 = vrot.lane.b32.xlu0 %v454, 32
        %v476 = vpop.permute.xlu0 %475
        %477 = vrot.lane.b32.xlu0 %v455, 32
        %v478 = vpop.permute.xlu0 %477
        %479 = vrot.lane.b32.xlu0 %v456, 32
        %v480 = vpop.permute.xlu0 %479
        %481 = vrot.lane.b32.xlu0 %v457, 32
        %v482 = vpop.permute.xlu0 %481
        %483 = vrot.lane.b32.xlu0 %v458, 32
        %v484 = vpop.permute.xlu0 %483
        %485 = vrot.lane.b32.xlu0 %v459, 32
        %v486 = vpop.permute.xlu0 %485
        %487 = vrot.lane.b32.xlu0 %v460, 32
        %v488 = vpop.permute.xlu0 %487
        %489 = vrot.lane.b32.xlu0 %v461, 32
        %v490 = vpop.permute.xlu0 %489
        %491 = vrot.lane.b32.xlu0 %v462, 32
        %v492 = vpop.permute.xlu0 %491
        %493 = vrot.lane.b32.xlu0 %v463, 32
        %v494 = vpop.permute.xlu0 %493
        %495 = vrot.lane.b32.xlu0 %v464, 32
        %v496 = vpop.permute.xlu0 %495
        %vm513 = vcmask 519424
        %514 = vst.msk [vmem:[#allocation3] sm:$0xf] %vm513, %v466
        %515 = vst.msk [vmem:[#allocation3 + $0x4] sm:$0xf] %vm513, %v468
        %516 = vst.msk [vmem:[#allocation3 + $0x8] sm:$0xf] %vm513, %v470
        %517 = vst.msk [vmem:[#allocation3 + $0xc] sm:$0xf] %vm513, %v472
        %518 = vst.msk [vmem:[#allocation3 + $0x10] sm:$0xf] %vm513, %v474
        %519 = vst.msk [vmem:[#allocation3 + $0x14] sm:$0xf] %vm513, %v476
        %520 = vst.msk [vmem:[#allocation3 + $0x18] sm:$0xf] %vm513, %v478
        %521 = vst.msk [vmem:[#allocation3 + $0x1c] sm:$0xf] %vm513, %v480
        %522 = vst.msk [vmem:[#allocation3 + $0x20] sm:$0xf] %vm513, %v482
        %523 = vst.msk [vmem:[#allocation3 + $0x24] sm:$0xf] %vm513, %v484
        %524 = vst.msk [vmem:[#allocation3 + $0x28] sm:$0xf] %vm513, %v486
        %525 = vst.msk [vmem:[#allocation3 + $0x2c] sm:$0xf] %vm513, %v488
        %526 = vst.msk [vmem:[#allocation3 + $0x30] sm:$0xf] %vm513, %v490
        %527 = vst.msk [vmem:[#allocation3 + $0x34] sm:$0xf] %vm513, %v492
        %528 = vst.msk [vmem:[#allocation3 + $0x38] sm:$0xf] %vm513, %v494
        %vm529 = vcmask 519424
        %vm530 = vsmask.f32 3328
        %vm531 = vmand %vm529, %vm530
        %v532 = vld [vmem:[#allocation3 + $0x3c] sm:$0xf]
        %v533 = vsel %vm531, %v496, %v532
        %534 = vst [vmem:[#allocation3 + $0x3c] sm:$0xf] %v533
        %v535 = vld [vmem:[#allocation2 + $0x2] sm:$0xff]
        %v536 = vld [vmem:[#allocation2 + $0xa] sm:$0xff]
        %v537 = vld [vmem:[#allocation2 + $0x12] sm:$0xff]
        %v538 = vld [vmem:[#allocation2 + $0x1a] sm:$0xff]
        %v539 = vld [vmem:[#allocation2 + $0x22] sm:$0xff]
        %v540 = vld [vmem:[#allocation2 + $0x2a] sm:$0xff]
        %v541 = vld [vmem:[#allocation2 + $0x32] sm:$0xff]
        %v542 = vld [vmem:[#allocation2 + $0x3a] sm:$0xff]
        %v543 = vld [vmem:[#allocation2 + $0x42] sm:$0xff]
        %v544 = vld [vmem:[#allocation2 + $0x4a] sm:$0xff]
        %v545 = vld [vmem:[#allocation2 + $0x52] sm:$0xff]
        %v546 = vld [vmem:[#allocation2 + $0x5a] sm:$0xff]
        %v547 = vld [vmem:[#allocation2 + $0x62] sm:$0xff]
        %v548 = vld [vmem:[#allocation2 + $0x6a] sm:$0xff]
        %v549 = vld [vmem:[#allocation2 + $0x72] sm:$0xff]
        %v550 = vld [vmem:[#allocation2 + $0x7a] sm:$0x3f]
        %v551 = vpack.c.bf16 %v536, %v535
        %v552 = vpack.c.bf16 %v538, %v537
        %v553 = vpack.c.bf16 %v540, %v539
        %v554 = vpack.c.bf16 %v542, %v541
        %v555 = vpack.c.bf16 %v544, %v543
        %v556 = vpack.c.bf16 %v546, %v545
        %v557 = vpack.c.bf16 %v548, %v547
        %v558 = vpack.c.bf16 %v550, %v549
        %v567 = vunpack.c.l.b16 %v551
        %v568 = vunpack.c.h.b16 %v551
        %v569 = vunpack.c.l.b16 %v552
        %v570 = vunpack.c.h.b16 %v552
        %v571 = vunpack.c.l.b16 %v553
        %v572 = vunpack.c.h.b16 %v553
        %v573 = vunpack.c.l.b16 %v554
        %v574 = vunpack.c.h.b16 %v554
        %v575 = vunpack.c.l.b16 %v555
        %v576 = vunpack.c.h.b16 %v555
        %v577 = vunpack.c.l.b16 %v556
        %v578 = vunpack.c.h.b16 %v556
        %v579 = vunpack.c.l.b16 %v557
        %v580 = vunpack.c.h.b16 %v557
        %v581 = vunpack.c.l.b16 %v558
        %v582 = vunpack.c.h.b16 %v558
        %v583 = vpack.c.b16 %v567, %v567
        %v584 = vpack.c.b16 %v568, %v568
        %v585 = vpack.c.b16 %v569, %v569
        %v586 = vpack.c.b16 %v570, %v570
        %v587 = vpack.c.b16 %v571, %v571
        %v588 = vpack.c.b16 %v572, %v572
        %v589 = vpack.c.b16 %v573, %v573
        %v590 = vpack.c.b16 %v574, %v574
        %v591 = vpack.c.b16 %v575, %v575
        %v592 = vpack.c.b16 %v576, %v576
        %v593 = vpack.c.b16 %v577, %v577
        %v594 = vpack.c.b16 %v578, %v578
        %v595 = vpack.c.b16 %v579, %v579
        %v596 = vpack.c.b16 %v580, %v580
        %v597 = vpack.c.b16 %v581, %v581
        %v598 = vpack.c.b16 %v582, %v582
        %599 = vrot.lane.b32.xlu0 %v583, 64
        %v600 = vpop.permute.xlu0 %599
        %601 = vrot.lane.b32.xlu0 %v584, 64
        %v602 = vpop.permute.xlu0 %601
        %603 = vrot.lane.b32.xlu0 %v585, 64
        %v604 = vpop.permute.xlu0 %603
        %605 = vrot.lane.b32.xlu0 %v586, 64
        %v606 = vpop.permute.xlu0 %605
        %607 = vrot.lane.b32.xlu0 %v587, 64
        %v608 = vpop.permute.xlu0 %607
        %609 = vrot.lane.b32.xlu0 %v588, 64
        %v610 = vpop.permute.xlu0 %609
        %611 = vrot.lane.b32.xlu0 %v589, 64
        %v612 = vpop.permute.xlu0 %611
        %613 = vrot.lane.b32.xlu0 %v590, 64
        %v614 = vpop.permute.xlu0 %613
        %615 = vrot.lane.b32.xlu0 %v591, 64
        %v616 = vpop.permute.xlu0 %615
        %617 = vrot.lane.b32.xlu0 %v592, 64
        %v618 = vpop.permute.xlu0 %617
        %619 = vrot.lane.b32.xlu0 %v593, 64
        %v620 = vpop.permute.xlu0 %619
        %621 = vrot.lane.b32.xlu0 %v594, 64
        %v622 = vpop.permute.xlu0 %621
        %623 = vrot.lane.b32.xlu0 %v595, 64
        %v624 = vpop.permute.xlu0 %623
        %625 = vrot.lane.b32.xlu0 %v596, 64
        %v626 = vpop.permute.xlu0 %625
        %627 = vrot.lane.b32.xlu0 %v597, 64
        %v628 = vpop.permute.xlu0 %627
        %629 = vrot.lane.b32.xlu0 %v598, 64
        %v630 = vpop.permute.xlu0 %629
        %vm647 = vcmask 781824
        %648 = vst.msk [vmem:[#allocation3] sm:$0xf] %vm647, %v600
        %649 = vst.msk [vmem:[#allocation3 + $0x4] sm:$0xf] %vm647, %v602
        %650 = vst.msk [vmem:[#allocation3 + $0x8] sm:$0xf] %vm647, %v604
        %651 = vst.msk [vmem:[#allocation3 + $0xc] sm:$0xf] %vm647, %v606
        %652 = vst.msk [vmem:[#allocation3 + $0x10] sm:$0xf] %vm647, %v608
        %653 = vst.msk [vmem:[#allocation3 + $0x14] sm:$0xf] %vm647, %v610
        %654 = vst.msk [vmem:[#allocation3 + $0x18] sm:$0xf] %vm647, %v612
        %655 = vst.msk [vmem:[#allocation3 + $0x1c] sm:$0xf] %vm647, %v614
        %656 = vst.msk [vmem:[#allocation3 + $0x20] sm:$0xf] %vm647, %v616
        %657 = vst.msk [vmem:[#allocation3 + $0x24] sm:$0xf] %vm647, %v618
        %658 = vst.msk [vmem:[#allocation3 + $0x28] sm:$0xf] %vm647, %v620
        %659 = vst.msk [vmem:[#allocation3 + $0x2c] sm:$0xf] %vm647, %v622
        %660 = vst.msk [vmem:[#allocation3 + $0x30] sm:$0xf] %vm647, %v624
        %661 = vst.msk [vmem:[#allocation3 + $0x34] sm:$0xf] %vm647, %v626
        %662 = vst.msk [vmem:[#allocation3 + $0x38] sm:$0xf] %vm647, %v628
        %vm663 = vcmask 780800
        %664 = vst.msk [vmem:[#allocation3 + $0x3c] sm:$0x7] %vm663, %v630
        %v665 = vld [vmem:[#allocation2 + $0x3] sm:$0xff]
        %v666 = vld [vmem:[#allocation2 + $0xb] sm:$0xff]
        %v667 = vld [vmem:[#allocation2 + $0x13] sm:$0xff]
        %v668 = vld [vmem:[#allocation2 + $0x1b] sm:$0xff]
        %v669 = vld [vmem:[#allocation2 + $0x23] sm:$0xff]
        %v670 = vld [vmem:[#allocation2 + $0x2b] sm:$0xff]
        %v671 = vld [vmem:[#allocation2 + $0x33] sm:$0xff]
        %v672 = vld [vmem:[#allocation2 + $0x3b] sm:$0xff]
        %v673 = vld [vmem:[#allocation2 + $0x43] sm:$0xff]
        %v674 = vld [vmem:[#allocation2 + $0x4b] sm:$0xff]
        %v675 = vld [vmem:[#allocation2 + $0x53] sm:$0xff]
        %v676 = vld [vmem:[#allocation2 + $0x5b] sm:$0xff]
        %v677 = vld [vmem:[#allocation2 + $0x63] sm:$0xff]
        %v678 = vld [vmem:[#allocation2 + $0x6b] sm:$0xff]
        %v679 = vld [vmem:[#allocation2 + $0x73] sm:$0xff]
        %v680 = vld [vmem:[#allocation2 + $0x7b] sm:$0x1f]
        %v681 = vpack.c.bf16 %v666, %v665
        %v682 = vpack.c.bf16 %v668, %v667
        %v683 = vpack.c.bf16 %v670, %v669
        %v684 = vpack.c.bf16 %v672, %v671
        %v685 = vpack.c.bf16 %v674, %v673
        %v686 = vpack.c.bf16 %v676, %v675
        %v687 = vpack.c.bf16 %v678, %v677
        %v688 = vpack.c.bf16 %v680, %v679
        %v697 = vunpack.c.l.b16 %v681
        %v698 = vunpack.c.h.b16 %v681
        %v699 = vunpack.c.l.b16 %v682
        %v700 = vunpack.c.h.b16 %v682
        %v701 = vunpack.c.l.b16 %v683
        %v702 = vunpack.c.h.b16 %v683
        %v703 = vunpack.c.l.b16 %v684
        %v704 = vunpack.c.h.b16 %v684
        %v705 = vunpack.c.l.b16 %v685
        %v706 = vunpack.c.h.b16 %v685
        %v707 = vunpack.c.l.b16 %v686
        %v708 = vunpack.c.h.b16 %v686
        %v709 = vunpack.c.l.b16 %v687
        %v710 = vunpack.c.h.b16 %v687
        %v711 = vunpack.c.l.b16 %v688
        %v712 = vunpack.c.h.b16 %v688
        %v713 = vpack.c.b16 %v697, %v697
        %v714 = vpack.c.b16 %v698, %v698
        %v715 = vpack.c.b16 %v699, %v699
        %v716 = vpack.c.b16 %v700, %v700
        %v717 = vpack.c.b16 %v701, %v701
        %v718 = vpack.c.b16 %v702, %v702
        %v719 = vpack.c.b16 %v703, %v703
        %v720 = vpack.c.b16 %v704, %v704
        %v721 = vpack.c.b16 %v705, %v705
        %v722 = vpack.c.b16 %v706, %v706
        %v723 = vpack.c.b16 %v707, %v707
        %v724 = vpack.c.b16 %v708, %v708
        %v725 = vpack.c.b16 %v709, %v709
        %v726 = vpack.c.b16 %v710, %v710
        %v727 = vpack.c.b16 %v711, %v711
        %v728 = vpack.c.b16 %v712, %v712
        %729 = vrot.lane.b32.xlu0 %v713, 96
        %v730 = vpop.permute.xlu0 %729
        %731 = vrot.lane.b32.xlu0 %v714, 96
        %v732 = vpop.permute.xlu0 %731
        %733 = vrot.lane.b32.xlu0 %v715, 96
        %v734 = vpop.permute.xlu0 %733
        %735 = vrot.lane.b32.xlu0 %v716, 96
        %v736 = vpop.permute.xlu0 %735
        %737 = vrot.lane.b32.xlu0 %v717, 96
        %v738 = vpop.permute.xlu0 %737
        %739 = vrot.lane.b32.xlu0 %v718, 96
        %v740 = vpop.permute.xlu0 %739
        %741 = vrot.lane.b32.xlu0 %v719, 96
        %v742 = vpop.permute.xlu0 %741
        %743 = vrot.lane.b32.xlu0 %v720, 96
        %v744 = vpop.permute.xlu0 %743
        %745 = vrot.lane.b32.xlu0 %v721, 96
        %v746 = vpop.permute.xlu0 %745
        %747 = vrot.lane.b32.xlu0 %v722, 96
        %v748 = vpop.permute.xlu0 %747
        %749 = vrot.lane.b32.xlu0 %v723, 96
        %v750 = vpop.permute.xlu0 %749
        %751 = vrot.lane.b32.xlu0 %v724, 96
        %v752 = vpop.permute.xlu0 %751
        %753 = vrot.lane.b32.xlu0 %v725, 96
        %v754 = vpop.permute.xlu0 %753
        %755 = vrot.lane.b32.xlu0 %v726, 96
        %v756 = vpop.permute.xlu0 %755
        %757 = vrot.lane.b32.xlu0 %v727, 96
        %v758 = vpop.permute.xlu0 %757
        %759 = vrot.lane.b32.xlu0 %v728, 96
        %v760 = vpop.permute.xlu0 %759
        %vm777 = vcmask 1044224
        %778 = vst.msk [vmem:[#allocation3] sm:$0xf] %vm777, %v730
        %779 = vst.msk [vmem:[#allocation3 + $0x4] sm:$0xf] %vm777, %v732
        %780 = vst.msk [vmem:[#allocation3 + $0x8] sm:$0xf] %vm777, %v734
        %781 = vst.msk [vmem:[#allocation3 + $0xc] sm:$0xf] %vm777, %v736
        %782 = vst.msk [vmem:[#allocation3 + $0x10] sm:$0xf] %vm777, %v738
        %783 = vst.msk [vmem:[#allocation3 + $0x14] sm:$0xf] %vm777, %v740
        %784 = vst.msk [vmem:[#allocation3 + $0x18] sm:$0xf] %vm777, %v742
        %785 = vst.msk [vmem:[#allocation3 + $0x1c] sm:$0xf] %vm777, %v744
        %786 = vst.msk [vmem:[#allocation3 + $0x20] sm:$0xf] %vm777, %v746
        %787 = vst.msk [vmem:[#allocation3 + $0x24] sm:$0xf] %vm777, %v748
        %788 = vst.msk [vmem:[#allocation3 + $0x28] sm:$0xf] %vm777, %v750
        %789 = vst.msk [vmem:[#allocation3 + $0x2c] sm:$0xf] %vm777, %v752
        %790 = vst.msk [vmem:[#allocation3 + $0x30] sm:$0xf] %vm777, %v754
        %791 = vst.msk [vmem:[#allocation3 + $0x34] sm:$0xf] %vm777, %v756
        %792 = vst.msk [vmem:[#allocation3 + $0x38] sm:$0xf] %vm777, %v758
        %vm793 = vcmask 1043200
        %vm794 = vsmask.f32 2304
        %vm795 = vmand %vm793, %vm794
        %v796 = vld [vmem:[#allocation3 + $0x3c] sm:$0x7]
        %v797 = vsel %vm795, %v760, %v796
        %798 = vst [vmem:[#allocation3 + $0x3c] sm:$0x7] %v797
        %v799 = vld [vmem:[#allocation3] sm:$0xf]
        %v800 = vld [vmem:[#allocation3 + $0x4] sm:$0xf]
        %v801 = vld [vmem:[#allocation3 + $0x8] sm:$0xf]
        %v802 = vld [vmem:[#allocation3 + $0xc] sm:$0xf]
        %v803 = vld [vmem:[#allocation3 + $0x10] sm:$0xf]
        %v804 = vld [vmem:[#allocation3 + $0x14] sm:$0xf]
        %v805 = vld [vmem:[#allocation3 + $0x18] sm:$0xf]
        %v806 = vld [vmem:[#allocation3 + $0x1c] sm:$0xf]
        %v807 = vld [vmem:[#allocation3 + $0x20] sm:$0xf]
        %v808 = vld [vmem:[#allocation3 + $0x24] sm:$0xf]
        %v809 = vld [vmem:[#allocation3 + $0x28] sm:$0xf]
        %v810 = vld [vmem:[#allocation3 + $0x2c] sm:$0xf]
        %v811 = vld [vmem:[#allocation3 + $0x30] sm:$0xf]
        %v812 = vld [vmem:[#allocation3 + $0x34] sm:$0xf]
        %v813 = vld [vmem:[#allocation3 + $0x38] sm:$0xf]
        %v814 = vld [vmem:[#allocation3 + $0x3c] sm:$0xf]
        %v815 = vld [vmem:[%s2] sm:$0xf]
        %v816 = vld [vmem:[%s2 + $0x4] sm:$0xf]
        %v817 = vld [vmem:[%s2 + $0x8] sm:$0xf]
        %v818 = vld [vmem:[%s2 + $0xc] sm:$0xf]
        %v819 = vld [vmem:[%s2 + $0x10] sm:$0xf]
        %v820 = vld [vmem:[%s2 + $0x14] sm:$0xf]
        %v821 = vld [vmem:[%s2 + $0x18] sm:$0xf]
        %v822 = vld [vmem:[%s2 + $0x1c] sm:$0xf]
        %v823 = vld [vmem:[%s2 + $0x20] sm:$0xf]
        %v824 = vld [vmem:[%s2 + $0x24] sm:$0xf]
        %v825 = vld [vmem:[%s2 + $0x28] sm:$0xf]
        %v826 = vld [vmem:[%s2 + $0x2c] sm:$0xf]
        %v827 = vld [vmem:[%s2 + $0x30] sm:$0xf]
        %v828 = vld [vmem:[%s2 + $0x34] sm:$0xf]
        %v829 = vld [vmem:[%s2 + $0x38] sm:$0xf]
        %v830 = vld [vmem:[%s2 + $0x3c] sm:$0xf]
        %v831 = vld [vmem:[#allocation7] sm:$0xff]
        %v832 = vld [vmem:[#allocation7 + $0x8] sm:$0xff]
        %v833 = vld [vmem:[#allocation7 + $0x10] sm:$0xff]
        %v834 = vld [vmem:[#allocation7 + $0x18] sm:$0xff]
        %v835 = vld [vmem:[#allocation7 + $0x20] sm:$0xff]
        %v836 = vld [vmem:[#allocation7 + $0x28] sm:$0xff]
        %v837 = vld [vmem:[#allocation7 + $0x30] sm:$0xff]
        %v838 = vld [vmem:[#allocation7 + $0x38] sm:$0xff]
        %v839 = vld [vmem:[#allocation7 + $0x40] sm:$0xff]
        %v840 = vld [vmem:[#allocation7 + $0x48] sm:$0xff]
        %v841 = vld [vmem:[#allocation7 + $0x50] sm:$0xff]
        %v842 = vld [vmem:[#allocation7 + $0x58] sm:$0xff]
        %v843 = vld [vmem:[#allocation7 + $0x60] sm:$0xff]
        %v844 = vld [vmem:[#allocation7 + $0x68] sm:$0xff]
        %v845 = vld [vmem:[#allocation7 + $0x70] sm:$0xff]
        %v846 = vld [vmem:[#allocation7 + $0x78] sm:$0xff]
        %vm847 = vcmp.gt.f32.partialorder %v831, -1e+29
        %vm848 = vcmp.gt.f32.partialorder %v832, -1e+29
        %vm849 = vcmp.gt.f32.partialorder %v833, -1e+29
        %vm850 = vcmp.gt.f32.partialorder %v834, -1e+29
        %vm851 = vcmp.gt.f32.partialorder %v835, -1e+29
        %vm852 = vcmp.gt.f32.partialorder %v836, -1e+29
        %vm853 = vcmp.gt.f32.partialorder %v837, -1e+29
        %vm854 = vcmp.gt.f32.partialorder %v838, -1e+29
        %vm855 = vcmp.gt.f32.partialorder %v839, -1e+29
        %vm856 = vcmp.gt.f32.partialorder %v840, -1e+29
        %vm857 = vcmp.gt.f32.partialorder %v841, -1e+29
        %vm858 = vcmp.gt.f32.partialorder %v842, -1e+29
        %vm859 = vcmp.gt.f32.partialorder %v843, -1e+29
        %vm860 = vcmp.gt.f32.partialorder %v844, -1e+29
        %vm861 = vcmp.gt.f32.partialorder %v845, -1e+29
        %vm862 = vcmp.gt.f32.partialorder %v846, -1e+29
        %v879 = vunpack.c.l.b16 %v799
        %v880 = vunpack.c.l.b16 %v800
        %v881 = vunpack.c.l.b16 %v801
        %v882 = vunpack.c.l.b16 %v802
        %v883 = vunpack.c.l.b16 %v803
        %v884 = vunpack.c.l.b16 %v804
        %v885 = vunpack.c.l.b16 %v805
        %v886 = vunpack.c.l.b16 %v806
        %v887 = vunpack.c.l.b16 %v807
        %v888 = vunpack.c.l.b16 %v808
        %v889 = vunpack.c.l.b16 %v809
        %v890 = vunpack.c.l.b16 %v810
        %v891 = vunpack.c.l.b16 %v811
        %v892 = vunpack.c.l.b16 %v812
        %v893 = vunpack.c.l.b16 %v813
        %v894 = vunpack.c.l.b16 %v814
        %v895 = vpack.c.b16 %v880, %v879
        %v896 = vpack.c.b16 %v882, %v881
        %v897 = vpack.c.b16 %v884, %v883
        %v898 = vpack.c.b16 %v886, %v885
        %v899 = vpack.c.b16 %v888, %v887
        %v900 = vpack.c.b16 %v890, %v889
        %v901 = vpack.c.b16 %v892, %v891
        %v902 = vpack.c.b16 %v894, %v893
        %v927 = vunpack.c.l.b16 %v815
        %v928 = vunpack.c.l.b16 %v816
        %v929 = vunpack.c.l.b16 %v817
        %v930 = vunpack.c.l.b16 %v818
        %v931 = vunpack.c.l.b16 %v819
        %v932 = vunpack.c.l.b16 %v820
        %v933 = vunpack.c.l.b16 %v821
        %v934 = vunpack.c.l.b16 %v822
        %v935 = vunpack.c.l.b16 %v823
        %v936 = vunpack.c.l.b16 %v824
        %v937 = vunpack.c.l.b16 %v825
        %v938 = vunpack.c.l.b16 %v826
        %v939 = vunpack.c.l.b16 %v827
        %v940 = vunpack.c.l.b16 %v828
        %v941 = vunpack.c.l.b16 %v829
        %v942 = vunpack.c.l.b16 %v830
        %v943 = vpack.c.b16 %v928, %v927
        %v944 = vpack.c.b16 %v930, %v929
        %v945 = vpack.c.b16 %v932, %v931
        %v946 = vpack.c.b16 %v934, %v933
        %v947 = vpack.c.b16 %v936, %v935
        %v948 = vpack.c.b16 %v938, %v937
        %v949 = vpack.c.b16 %v940, %v939
        %v950 = vpack.c.b16 %v942, %v941
        %959 = vmatprep.subr.bf16.mxu0 0
        %960 = vmatpush1.bf16.msra.mxu0 %v950
        %961 = vmatprep.subr.bf16.mxu0 0
        %962 = vmatpush1.bf16.msra.mxu0 %v949
        %963 = vmatprep.subr.bf16.mxu0 0
        %964 = vmatpush1.bf16.msra.mxu0 %v948
        %965 = vmatprep.subr.bf16.mxu0 0
        %966 = vmatpush1.bf16.msra.mxu0 %v947
        %967 = vmatprep.subr.bf16.mxu0 0
        %968 = vmatpush1.bf16.msra.mxu0 %v946
        %969 = vmatprep.subr.bf16.mxu0 0
        %970 = vmatpush1.bf16.msra.mxu0 %v945
        %971 = vmatprep.subr.bf16.mxu0 0
        %972 = vmatpush1.bf16.msra.mxu0 %v944
        %973 = vmatprep.subr.bf16.mxu0 0
        %974 = vmatpush1.bf16.msra.mxu0 %v943
        %975 = vmatprep.subr.bf16.mxu0 0
        %976 = vmatpush2.bf16.msra.mxu0 0
        %977 = vmatprep.subr.bf16.mxu0 0
        %978 = vmatpush2.bf16.msra.mxu0 0
        %979 = vmatprep.subr.bf16.mxu0 0
        %980 = vmatpush2.bf16.msra.mxu0 0
        %981 = vmatprep.subr.bf16.mxu0 0
        %982 = vmatpush2.bf16.msra.mxu0 0
        %983 = vmatprep.subr.bf16.mxu0 0
        %984 = vmatpush2.bf16.msra.mxu0 0
        %985 = vmatprep.subr.bf16.mxu0 0
        %986 = vmatpush2.bf16.msra.mxu0 0
        %987 = vmatprep.subr.bf16.mxu0 0
        %988 = vmatpush2.bf16.msra.mxu0 0
        %989 = vmatprep.subr.bf16.mxu0 0
        %990 = vmatpush2.bf16.msra.mxu0 0
        %991 = vmatprep.mubr.bf16.mxu0 0
        %992 = vmatmul.mubr.bf16.gmra.mxu0 %v895
        %v993 = vpop.f32.mrf.mxu0
        %v994 = vadd.f32 %v831, %v993
        %v995 = vpop.f32.mrf.mxu0
        %v996 = vpop.f32.mrf.mxu0
        %v997 = vadd.f32 %v832, %v996
        %v998 = vpop.f32.mrf.mxu0
        %999 = vmatprep.mubr.bf16.mxu0 0
        %1000 = vmatmul.mubr.bf16.gmra.mxu0 %v896
        %v1001 = vpop.f32.mrf.mxu0
        %v1002 = vadd.f32 %v833, %v1001
        %v1003 = vpop.f32.mrf.mxu0
        %v1004 = vpop.f32.mrf.mxu0
        %v1005 = vadd.f32 %v834, %v1004
        %v1006 = vpop.f32.mrf.mxu0
        %1007 = vmatprep.mubr.bf16.mxu0 0
        %1008 = vmatmul.mubr.bf16.gmra.mxu0 %v897
        %v1009 = vpop.f32.mrf.mxu0
        %v1010 = vadd.f32 %v835, %v1009
        %v1011 = vpop.f32.mrf.mxu0
        %v1012 = vpop.f32.mrf.mxu0
        %v1013 = vadd.f32 %v836, %v1012
        %v1014 = vpop.f32.mrf.mxu0
        %1015 = vmatprep.mubr.bf16.mxu0 0
        %1016 = vmatmul.mubr.bf16.gmra.mxu0 %v898
        %v1017 = vpop.f32.mrf.mxu0
        %v1018 = vadd.f32 %v837, %v1017
        %v1019 = vpop.f32.mrf.mxu0
        %v1020 = vpop.f32.mrf.mxu0
        %v1021 = vadd.f32 %v838, %v1020
        %v1022 = vpop.f32.mrf.mxu0
        %1023 = vmatprep.mubr.bf16.mxu0 0
        %1024 = vmatmul.mubr.bf16.gmra.mxu0 %v899
        %v1025 = vpop.f32.mrf.mxu0
        %v1026 = vadd.f32 %v839, %v1025
        %v1027 = vpop.f32.mrf.mxu0
        %v1028 = vpop.f32.mrf.mxu0
        %v1029 = vadd.f32 %v840, %v1028
        %v1030 = vpop.f32.mrf.mxu0
        %1031 = vmatprep.mubr.bf16.mxu0 0
        %1032 = vmatmul.mubr.bf16.gmra.mxu0 %v900
        %v1033 = vpop.f32.mrf.mxu0
        %v1034 = vadd.f32 %v841, %v1033
        %v1035 = vpop.f32.mrf.mxu0
        %v1036 = vpop.f32.mrf.mxu0
        %v1037 = vadd.f32 %v842, %v1036
        %v1038 = vpop.f32.mrf.mxu0
        %1039 = vmatprep.mubr.bf16.mxu0 0
        %1040 = vmatmul.mubr.bf16.gmra.mxu0 %v901
        %v1041 = vpop.f32.mrf.mxu0
        %v1042 = vadd.f32 %v843, %v1041
        %v1043 = vpop.f32.mrf.mxu0
        %v1044 = vpop.f32.mrf.mxu0
        %v1045 = vadd.f32 %v844, %v1044
        %v1046 = vpop.f32.mrf.mxu0
        %1047 = vmatprep.mubr.bf16.mxu0 0
        %1048 = vmatmul.mubr.bf16.gmra.mxu0 %v902
        %v1049 = vpop.f32.mrf.mxu0
        %v1050 = vadd.f32 %v845, %v1049
        %v1051 = vpop.f32.mrf.mxu0
        %v1052 = vpop.f32.mrf.mxu0
        %v1053 = vadd.f32 %v846, %v1052
        %v1054 = vpop.f32.mrf.mxu0
        %1055 = vdwg.mxu0
        %v1056 = vsel %vm847, %v994, -1e+30
        %v1057 = vsel %vm848, %v997, -1e+30
        %v1058 = vsel %vm849, %v1002, -1e+30
        %v1059 = vsel %vm850, %v1005, -1e+30
        %v1060 = vsel %vm851, %v1010, -1e+30
        %v1061 = vsel %vm852, %v1013, -1e+30
        %v1062 = vsel %vm853, %v1018, -1e+30
        %v1063 = vsel %vm854, %v1021, -1e+30
        %v1064 = vsel %vm855, %v1026, -1e+30
        %v1065 = vsel %vm856, %v1029, -1e+30
        %v1066 = vsel %vm857, %v1034, -1e+30
        %v1067 = vsel %vm858, %v1037, -1e+30
        %v1068 = vsel %vm859, %v1042, -1e+30
        %v1069 = vsel %vm860, %v1045, -1e+30
        %v1070 = vsel %vm861, %v1050, -1e+30
        %v1071 = vsel %vm862, %v1053, -1e+30
        %v1072 = vmax.f32 %v1056, %v1057
        %v1073 = vrot.slane %v1072, 4
        %v1074 = vmax.f32 %v1072, %v1073
        %v1075 = vrot.slane %v1074, 2
        %v1076 = vmax.f32 %v1074, %v1075
        %v1077 = vrot.slane %v1076, 1
        %v1078 = vmax.f32 %v1076, %v1077
        %v1079 = vmax.f32 %v1058, %v1059
        %v1080 = vrot.slane %v1079, 4
        %v1081 = vmax.f32 %v1079, %v1080
        %v1082 = vrot.slane %v1081, 2
        %v1083 = vmax.f32 %v1081, %v1082
        %v1084 = vrot.slane %v1083, 1
        %v1085 = vmax.f32 %v1083, %v1084
        %v1086 = vmax.f32 %v1060, %v1061
        %v1087 = vrot.slane %v1086, 4
        %v1088 = vmax.f32 %v1086, %v1087
        %v1089 = vrot.slane %v1088, 2
        %v1090 = vmax.f32 %v1088, %v1089
        %v1091 = vrot.slane %v1090, 1
        %v1092 = vmax.f32 %v1090, %v1091
        %v1093 = vmax.f32 %v1062, %v1063
        %v1094 = vrot.slane %v1093, 4
        %v1095 = vmax.f32 %v1093, %v1094
        %v1096 = vrot.slane %v1095, 2
        %v1097 = vmax.f32 %v1095, %v1096
        %v1098 = vrot.slane %v1097, 1
        %v1099 = vmax.f32 %v1097, %v1098
        %v1100 = vmax.f32 %v1064, %v1065
        %v1101 = vrot.slane %v1100, 4
        %v1102 = vmax.f32 %v1100, %v1101
        %v1103 = vrot.slane %v1102, 2
        %v1104 = vmax.f32 %v1102, %v1103
        %v1105 = vrot.slane %v1104, 1
        %v1106 = vmax.f32 %v1104, %v1105
        %v1107 = vmax.f32 %v1066, %v1067
        %v1108 = vrot.slane %v1107, 4
        %v1109 = vmax.f32 %v1107, %v1108
        %v1110 = vrot.slane %v1109, 2
        %v1111 = vmax.f32 %v1109, %v1110
        %v1112 = vrot.slane %v1111, 1
        %v1113 = vmax.f32 %v1111, %v1112
        %v1114 = vmax.f32 %v1068, %v1069
        %v1115 = vrot.slane %v1114, 4
        %v1116 = vmax.f32 %v1114, %v1115
        %v1117 = vrot.slane %v1116, 2
        %v1118 = vmax.f32 %v1116, %v1117
        %v1119 = vrot.slane %v1118, 1
        %v1120 = vmax.f32 %v1118, %v1119
        %v1121 = vmax.f32 %v1070, %v1071
        %v1122 = vrot.slane %v1121, 4
        %v1123 = vmax.f32 %v1121, %v1122
        %v1124 = vrot.slane %v1123, 2
        %v1125 = vmax.f32 %v1123, %v1124
        %v1126 = vrot.slane %v1125, 1
        %v1127 = vmax.f32 %v1125, %v1126
        %v1128 = vmax.f32 %v1078, 0.0
        %v1129 = vmax.f32 %v1085, 0.0
        %v1130 = vmax.f32 %v1092, 0.0
        %v1131 = vmax.f32 %v1099, 0.0
        %v1132 = vmax.f32 %v1106, 0.0
        %v1133 = vmax.f32 %v1113, 0.0
        %v1134 = vmax.f32 %v1120, 0.0
        %v1135 = vmax.f32 %v1127, 0.0
        %v1136 = vpack.c.bf16 %v1128, %v1128
        %v1137 = vpack.c.bf16 %v1129, %v1129
        %v1138 = vpack.c.bf16 %v1130, %v1130
        %v1139 = vpack.c.bf16 %v1131, %v1131
        %v1140 = vpack.c.bf16 %v1132, %v1132
        %v1141 = vpack.c.bf16 %v1133, %v1133
        %v1142 = vpack.c.bf16 %v1134, %v1134
        %v1143 = vpack.c.bf16 %v1135, %v1135
        %v1144 = vld [vmem:[#allocation10] sm:$0xf]
        %v1145 = vld [vmem:[#allocation10 + $0x4] sm:$0xf]
        %v1146 = vld [vmem:[#allocation10 + $0x8] sm:$0xf]
        %v1147 = vld [vmem:[#allocation10 + $0xc] sm:$0xf]
        %v1148 = vld [vmem:[#allocation10 + $0x10] sm:$0xf]
        %v1149 = vld [vmem:[#allocation10 + $0x14] sm:$0xf]
        %v1150 = vld [vmem:[#allocation10 + $0x18] sm:$0xf]
        %v1151 = vld [vmem:[#allocation10 + $0x1c] sm:$0xf]
        %v1152 = vld [vmem:[#allocation10 + $0x20] sm:$0xf]
        %v1153 = vld [vmem:[#allocation10 + $0x24] sm:$0xf]
        %v1154 = vld [vmem:[#allocation10 + $0x28] sm:$0xf]
        %v1155 = vld [vmem:[#allocation10 + $0x2c] sm:$0xf]
        %v1156 = vld [vmem:[#allocation10 + $0x30] sm:$0xf]
        %v1157 = vld [vmem:[#allocation10 + $0x34] sm:$0xf]
        %v1158 = vld [vmem:[#allocation10 + $0x38] sm:$0xf]
        %v1159 = vld [vmem:[#allocation10 + $0x3c] sm:$0xf]
        %v1160 = vld [vmem:[%s5] sm:$0x1]
        %v1162 = vlaneseq
        %v1163 = vshrl.u32 %v1162, 7
        %v1164 = vsub.s32 0, %v1163
        %v1165 = vrot.slane %v1160, %v1164
        %v1175 = vunpack.c.l.b16 %v1136
        %v1176 = vunpack.c.l.b16 %v1137
        %v1177 = vunpack.c.l.b16 %v1138
        %v1178 = vunpack.c.l.b16 %v1139
        %v1179 = vunpack.c.l.b16 %v1140
        %v1180 = vunpack.c.l.b16 %v1141
        %v1181 = vunpack.c.l.b16 %v1142
        %v1182 = vunpack.c.l.b16 %v1143
        %vm1183 = vcmask 1041409
        %v1184 = vsel %vm1183, %v1176, %v1175
        %vm1185 = vcmask 1042434
        %v1186 = vsel %vm1185, %v1177, %v1184
        %vm1187 = vcmask 1043459
        %v1188 = vsel %vm1187, %v1178, %v1186
        %vm1189 = vcmask 1044484
        %v1190 = vsel %vm1189, %v1179, %v1188
        %vm1191 = vcmask 1045509
        %v1192 = vsel %vm1191, %v1180, %v1190
        %vm1193 = vcmask 1046534
        %v1194 = vsel %vm1193, %v1181, %v1192
        %vm1195 = vcmask 1047559
        %v1196 = vsel %vm1195, %v1182, %v1194
        %v1197 = vpack.c.b16 %v1196, %v1196
        %v1215 = vunpack.c.l.b16 %v1144
        %v1216 = vunpack.c.l.b16 %v1145
        %v1217 = vunpack.c.l.b16 %v1146
        %v1218 = vunpack.c.l.b16 %v1147
        %v1219 = vunpack.c.l.b16 %v1148
        %v1220 = vunpack.c.l.b16 %v1149
        %v1221 = vunpack.c.l.b16 %v1150
        %v1222 = vunpack.c.l.b16 %v1151
        %v1223 = vunpack.c.l.b16 %v1152
        %v1224 = vunpack.c.l.b16 %v1153
        %v1225 = vunpack.c.l.b16 %v1154
        %v1226 = vunpack.c.l.b16 %v1155
        %v1227 = vunpack.c.l.b16 %v1156
        %v1228 = vunpack.c.l.b16 %v1157
        %v1229 = vunpack.c.l.b16 %v1158
        %v1230 = vunpack.c.l.b16 %v1159
        %v1231 = vpack.c.b16 %v1216, %v1215
        %v1232 = vpack.c.b16 %v1218, %v1217
        %v1233 = vpack.c.b16 %v1220, %v1219
        %v1234 = vpack.c.b16 %v1222, %v1221
        %v1235 = vpack.c.b16 %v1224, %v1223
        %v1236 = vpack.c.b16 %v1226, %v1225
        %v1237 = vpack.c.b16 %v1228, %v1227
        %v1238 = vpack.c.b16 %v1230, %v1229
        %1247 = vmatprep.subr.bf16.mxu0 0
        %1248 = vmatpush1.bf16.msra.mxu0 %v1238
        %1249 = vmatprep.subr.bf16.mxu0 0
        %1250 = vmatpush1.bf16.msra.mxu0 %v1237
        %1251 = vmatprep.subr.bf16.mxu0 0
        %1252 = vmatpush1.bf16.msra.mxu0 %v1236
        %1253 = vmatprep.subr.bf16.mxu0 0
        %1254 = vmatpush1.bf16.msra.mxu0 %v1235
        %1255 = vmatprep.subr.bf16.mxu0 0
        %1256 = vmatpush1.bf16.msra.mxu0 %v1234
        %1257 = vmatprep.subr.bf16.mxu0 0
        %1258 = vmatpush1.bf16.msra.mxu0 %v1233
        %1259 = vmatprep.subr.bf16.mxu0 0
        %1260 = vmatpush1.bf16.msra.mxu0 %v1232
        %1261 = vmatprep.subr.bf16.mxu0 0
        %1262 = vmatpush1.bf16.msra.mxu0 %v1231
        %1263 = vmatprep.subr.bf16.mxu0 0
        %1264 = vmatpush2.bf16.msra.mxu0 0
        %1265 = vmatprep.subr.bf16.mxu0 0
        %1266 = vmatpush2.bf16.msra.mxu0 0
        %1267 = vmatprep.subr.bf16.mxu0 0
        %1268 = vmatpush2.bf16.msra.mxu0 0
        %1269 = vmatprep.subr.bf16.mxu0 0
        %1270 = vmatpush2.bf16.msra.mxu0 0
        %1271 = vmatprep.subr.bf16.mxu0 0
        %1272 = vmatpush2.bf16.msra.mxu0 0
        %1273 = vmatprep.subr.bf16.mxu0 0
        %1274 = vmatpush2.bf16.msra.mxu0 0
        %1275 = vmatprep.subr.bf16.mxu0 0
        %1276 = vmatpush2.bf16.msra.mxu0 0
        %1277 = vmatprep.subr.bf16.mxu0 0
        %1278 = vmatpush2.bf16.msra.mxu0 0
        %1279 = vmatprep.mubr.bf16.mxu0 0
        %1280 = vmatmul.mubr.bf16.gmra.mxu0 %v1197
        %v1281 = vpop.f32.mrf.mxu0
        %v1282 = vadd.f32 %v1165, %v1281
        %v1283 = vpop.f32.mrf.mxu0
        %v1284 = vpop.f32.mrf.mxu0
        %v1285 = vpop.f32.mrf.mxu0
        %1286 = vdwg.mxu0
        %1287 = vst [vmem:[%s213] sm:$0xff] %v1282
        %s1288 = sand.u32 %s120, 1
        %s1289 = scalar_lea.sflag [#allocation9], %s1288
        %s1290 = sand.u32 %s120, 1
        %s1291 = smul.addr %s1290, 8
        %s1292 = scalar_lea.vmem [#allocation12], %s1291
        // Predicated region
        $region93: #{tpu_custom_call.1} parent=35 // pred_check
          %p1293 = pneg %p130
        $region94: #{tpu_custom_call.1} parent=35 // pred_check_branch
          %1295 = sbr.rel (%p1293) target = $region96
        $region95: #{tpu_custom_call.1} parent=35 // pred_region
          %s1297 = ssub.s32 128, 128
          %1298 = vsyncadd %s1289, %s1297
          %s1299 = smul.addr %s28, 128
          %s1300 = scalar_lea.hbm %s6, %s1299
          %s1302 = sshll.u32 %s1292, 4
          %s1303 = int_to_ptr.vmem [resolvable:$true] %s1302
          %1305 = dma.vmem_to_hbm [thread:$0]  %s1303, 128, %s1300, %s1289
        $region96: #{tpu_custom_call.1} parent=35 // pred_fallthru
          _
      $region36: #{tpu_custom_call.1} parent=5 // pred_fallthru
        _
      %p1306 = scmp.le.s32.totalorder 2, %s23
      // Predicated region
      $region97: #{tpu_custom_call.1} parent=5 // pred_check
        %p1307 = pneg %p1306
      $region98: #{tpu_custom_call.1} parent=5 // pred_check_branch
        %1309 = sbr.rel (%p1307) target = $region100
      $region99: #{tpu_custom_call.1} parent=5 // pred_region
        %s1310 = ssub.s32 %s23, 2
        // Predicated region
        $region101: #{tpu_custom_call.1} parent=99 // pred_check
          %p1311 = pneg %p136
        $region102: #{tpu_custom_call.1} parent=99 // pred_check_branch
          %1313 = sbr.rel (%p1311) target = $region104
        $region103: #{tpu_custom_call.1} parent=99 // pred_region
          %s1314 = sand.u32 %s121, 1
          %s1315 = scalar_lea.sflag [#allocation9], %s1314
          %s1316 = sand.u32 %s121, 1
          %s1317 = smul.addr %s1316, 8
          %s1318 = scalar_lea.vmem [#allocation12], %s1317
          %1319 = dma.done %s1315, 128
        $region104: #{tpu_custom_call.1} parent=99 // pred_fallthru
          _
      $region100: #{tpu_custom_call.1} parent=5 // pred_fallthru
        _
    $region6: #{tpu_custom_call.1} parent=1 // loop_footer
      %s27 = sadd.s32 1, %s23
    $region7: #{tpu_custom_call.1} parent=1 // loop_footer_branch
      %22 = sbr.rel target = $region3
    $region8: #{tpu_custom_call.1} parent=1 // loop_exit
      _
    %1320 = vsyncpa [#allocation8], 1
    %s1321 = scalar_lea.sflag [#allocation8], 1
    %1322 = vsyncpa %s1321, 1
    %1323 = vsyncpa [#allocation11], 1
    %1324 = vsyncpa [#allocation9], 1
    %s1325 = scalar_lea.sflag [#allocation9], 1
    %1326 = vsyncpa %s1325, 1
  %1327 = vsyncmov [#allocation4]
  %s1328 = vpop.sfrf %1327
  %p1329 = scmp.eq.s32.totalorder %s1328, 0
  %p1330 = pneg %p1329
  %1332 = shalt.err (%p1330)

</llo_original>
